<compile_context>
chip_gen: v7x
topology: tpu7x:2x2x1
jax: 0.10.0
libtpu: 0.0.40
codegen_flags: <defaults>
</compile_context>

<pallas_src>
import functools

import jax
import jax.numpy as jnp
from jax import lax
from jax.experimental import pallas as pl
from jax.experimental.pallas import tpu as pltpu


def _round_up(x, m):
    return ((x + m - 1) // m) * m


def _pick_time_chunk(seq_len, max_chunk=256):
    """Largest chunk <= max_chunk that divides seq_len (amortizes grid overhead)."""
    if seq_len <= max_chunk:
        return seq_len
    for tc in range(max_chunk, 0, -1):
        if seq_len % tc == 0:
            return tc
    return seq_len


def _decoder_kernel(x0_ref, h0_ref, wgx_ref, wgh_ref, wo_ref, bg_ref, bo_ref,
                    out_ref, hfin_ref, x_scr, h_scr, *, H, Hg, Tc, unroll):
    """One T-chunk of the GRU decoder recurrence.

    x0_ref : (Bp, Ep)   first decoder input (padded, f32)
    h0_ref : (Bp, H)    initial hidden (compact H, f32)
    wgx_ref: (Ep, NG)   bf16, packed gate cols [r|z|n_x|n_h], x-half (emb_in folded in)
    wgh_ref: (H,  NG)   bf16, packed gate cols, h-half
    wo_ref : (H,  Ep)   bf16, emb_out weight
    bg_ref : (Bp, NG)   f32, fused gate bias (pre-broadcast)
    bo_ref : (Bp, Ep)   f32, emb_out bias (pre-broadcast)
    out_ref: (Tc, Bp, Ep) f32, pre-tanh y_t for this chunk
    hfin_ref:(Bp, H)    final hidden
    x_scr/h_scr:        carried state across chunks (persistent VMEM scratch)
    """
    c = pl.program_id(0)

    @pl.when(c == 0)
    def _():
        x_scr[...] = x0_ref[...]
        h_scr[...] = h0_ref[...]

    # Only the tiny biases are hoisted as values; weights are read per-dot so
    # the unrolled loop body doesn't pin large values in vregs.
    bg = bg_ref[...]
    bo = bo_ref[...]

    def step(t, carry):
        x, h = carry
        # Split gate matmul: the h-half depends only on h_new of the previous
        # step (can overlap the tanh(y) -> x chain); no concat copy.
        g = (jnp.dot(h.astype(jnp.bfloat16), wgh_ref[...],
                     preferred_element_type=jnp.float32)
             + jnp.dot(x.astype(jnp.bfloat16), wgx_ref[...],
                       preferred_element_type=jnp.float32)
             + bg)
        s = jax.nn.sigmoid(g[:, 0:2 * Hg])          # one EUP pass over r|z lanes
        r = s[:, 0:H]
        z = s[:, Hg:Hg + H]
        n = jnp.tanh(g[:, 2 * Hg:2 * Hg + H] + r * g[:, 3 * Hg:3 * Hg + H])
        h_new = (1.0 - z) * n + z * h
        y = jnp.dot(h_new.astype(jnp.bfloat16), wo_ref[...],
                    preferred_element_type=jnp.float32) + bo
        out_ref[t] = y                              # pre-tanh output
        return jnp.tanh(y), h_new                   # next dec_in, hidden

    x_fin, h_fin = lax.fori_loop(0, Tc, step, (x_scr[...], h_scr[...]),
                                 unroll=unroll)
    x_scr[...] = x_fin
    h_scr[...] = h_fin
    hfin_ref[...] = h_fin


def decoder_forward(dec_in0, h0, params, seq_len, *, max_time_chunk=256):
    """dec_in0: (B, E) first decoder input; h0: (B, H) initial hidden."""
    B, E = dec_in0.shape
    H = h0.shape[-1]

    Bp = _round_up(B, 16)            # sublane pad (covers bf16 16-row packing)
    Ep = _round_up(E, 128)           # lane pad for inputs/outputs
    NG = _round_up(4 * H, 128)       # packed gate width (128 when 4H <= 128)
    Hg = NG // 4                     # per-gate column stride (>= H)

    f32, bf16 = jnp.float32, jnp.bfloat16
    w_in_t = params["w_in"].T.astype(f32)      # (E, H)
    w_ih_t = params["w_ih"].T.astype(f32)      # (H, 3H)
    w_hh_t = params["w_hh"].T.astype(f32)      # (H, 3H)
    w_out_t = params["w_out"].T.astype(f32)    # (H, E)

    # Fold emb_in into the GRU input projection (exact affine composition).
    w_comb = w_in_t @ w_ih_t                                      # (E, 3H)
    b_comb = params["b_in"].astype(f32) @ w_ih_t + params["b_ih"].astype(f32)
    b_hh = params["b_hh"].astype(f32)

    # Packed gate slabs. Columns: [r | z | n_x | n_h], each in an Hg-wide block
    # with the real gate occupying the first H lanes of its block.
    wgx = jnp.zeros((Ep, NG), f32)
    wgx = wgx.at[:E, 0:H].set(w_comb[:, 0:H])
    wgx = wgx.at[:E, Hg:Hg + H].set(w_comb[:, H:2 * H])
    wgx = wgx.at[:E, 2 * Hg:2 * Hg + H].set(w_comb[:, 2 * H:3 * H])

    wgh = jnp.zeros((H, NG), f32)
    wgh = wgh.at[:, 0:H].set(w_hh_t[:, 0:H])
    wgh = wgh.at[:, Hg:Hg + H].set(w_hh_t[:, H:2 * H])
    wgh = wgh.at[:, 3 * Hg:3 * Hg + H].set(w_hh_t[:, 2 * H:3 * H])

    bg = jnp.zeros((NG,), f32)
    bg = bg.at[0:H].set(b_comb[0:H] + b_hh[0:H])
    bg = bg.at[Hg:Hg + H].set(b_comb[H:2 * H] + b_hh[H:2 * H])
    bg = bg.at[2 * Hg:2 * Hg + H].set(b_comb[2 * H:3 * H])
    bg = bg.at[3 * Hg:3 * Hg + H].set(b_hh[2 * H:3 * H])
    bg = jnp.broadcast_to(bg[None, :], (Bp, NG))                  # hoisted broadcast

    wo = jnp.zeros((H, Ep), f32).at[:, :E].set(w_out_t)
    bo = jnp.zeros((Ep,), f32).at[:E].set(params["b_out"].astype(f32))
    bo = jnp.broadcast_to(bo[None, :], (Bp, Ep))

    x0 = jnp.zeros((Bp, Ep), f32).at[:B, :E].set(dec_in0.astype(f32))
    h0p = jnp.zeros((Bp, H), f32).at[:B, :].set(h0.astype(f32))

    Tc = _pick_time_chunk(seq_len, max_time_chunk)
    num_chunks = seq_len // Tc
    unroll = min(Tc, 8)

    kernel = functools.partial(_decoder_kernel, H=H, Hg=Hg, Tc=Tc, unroll=unroll)

    out_p, hfin_p = pl.pallas_call(
        kernel,
        grid=(num_chunks,),
        in_specs=[
            pl.BlockSpec((Bp, Ep), lambda c: (0, 0)),    # x0
            pl.BlockSpec((Bp, H), lambda c: (0, 0)),     # h0
            pl.BlockSpec((Ep, NG), lambda c: (0, 0)),    # wgx (bf16)
            pl.BlockSpec((H, NG), lambda c: (0, 0)),     # wgh (bf16)
            pl.BlockSpec((H, Ep), lambda c: (0, 0)),     # wo  (bf16)
            pl.BlockSpec((Bp, NG), lambda c: (0, 0)),    # bg
            pl.BlockSpec((Bp, Ep), lambda c: (0, 0)),    # bo
        ],
        out_specs=(
            pl.BlockSpec((Tc, Bp, Ep), lambda c: (c, 0, 0)),   # per-chunk writeback
            pl.BlockSpec((Bp, H), lambda c: (0, 0)),           # resident final hidden
        ),
        out_shape=(jax.ShapeDtypeStruct((seq_len, Bp, Ep), f32),
                   jax.ShapeDtypeStruct((Bp, H), f32)),
        scratch_shapes=[pltpu.VMEM((Bp, Ep), f32),             # carried x
                        pltpu.VMEM((Bp, H), f32)],             # carried h
        compiler_params=pltpu.CompilerParams(
            dimension_semantics=("arbitrary",)),               # time is sequential
    )(x0, h0p, wgx.astype(bf16), wgh.astype(bf16), wo.astype(bf16), bg, bo)

    return out_p[:, :B, :E], hfin_p[:B, :]


def decoder_reference(dec_in0, h0, params, seq_len):
    """Pure-JAX (f32) reference mirroring the PyTorch forward (eval mode)."""
    H = h0.shape[-1]
    x, h = dec_in0, h0
    outs = []
    for _ in range(seq_len):
        xe = x @ params["w_in"].T + params["b_in"]
        gi = xe @ params["w_ih"].T + params["b_ih"]
        gh = h @ params["w_hh"].T + params["b_hh"]
        r = jax.nn.sigmoid(gi[:, :H] + gh[:, :H])
        z = jax.nn.sigmoid(gi[:, H:2 * H] + gh[:, H:2 * H])
        n = jnp.tanh(gi[:, 2 * H:] + r * gh[:, 2 * H:])
        h = (1.0 - z) * n + z * h
        y = h @ params["w_out"].T + params["b_out"]
        outs.append(y)
        x = jnp.tanh(y)
    return jnp.stack(outs), h


if __name__ == "__main__":
    B, H, E, T = 4, 32, 16, 8   # batch, hidden_size, emb_size (output_size), seq_len

    key = jax.random.PRNGKey(0)
    ks = jax.random.split(key, 12)
    scale = 0.1
    params = {
        "w_in":  scale * jax.random.normal(ks[0], (H, E), jnp.float32),
        "b_in":  scale * jax.random.normal(ks[1], (H,), jnp.float32),
        "w_ih":  scale * jax.random.normal(ks[2], (3 * H, H), jnp.float32),
        "b_ih":  scale * jax.random.normal(ks[3], (3 * H,), jnp.float32),
        "w_hh":  scale * jax.random.normal(ks[4], (3 * H, H), jnp.float32),
        "b_hh":  scale * jax.random.normal(ks[5], (3 * H,), jnp.float32),
        "w_out": scale * jax.random.normal(ks[6], (E, H), jnp.float32),
        "b_out": scale * jax.random.normal(ks[7], (E,), jnp.float32),
    }
    dec_in0 = jax.random.normal(ks[8], (B, E), jnp.float32)
    h0 = jax.random.normal(ks[9], (B, H), jnp.float32)

    out_seq, h_fin = decoder_forward(dec_in0, h0, params, T)
    jax.block_until_ready((out_seq, h_fin))

    ref_seq, ref_h = decoder_reference(dec_in0, h0, params, T)
    assert out_seq.shape == (T, B, E) and h_fin.shape == (B, H)
    # Tolerance reflects bf16 MXU operands (f32 accumulation) vs. pure-f32 ref.
    assert jnp.allclose(out_seq, ref_seq, atol=2e-2, rtol=2e-2)
    assert jnp.allclose(h_fin, ref_h, atol=2e-2, rtol=2e-2)

    print("KERNEL_OK")
</pallas_src>

<mosaic_0001>
module attributes {stable_mosaic.version = 11 : i64} {
  func.func @_decoder_kernel(%arg0: i32, %arg1: memref<16x128xf32, #tpu.memory_space<vmem>>, %arg2: memref<16x32xf32, #tpu.memory_space<vmem>>, %arg3: memref<128x128xbf16, #tpu.memory_space<vmem>>, %arg4: memref<32x128xbf16, #tpu.memory_space<vmem>>, %arg5: memref<32x128xbf16, #tpu.memory_space<vmem>>, %arg6: memref<16x128xf32, #tpu.memory_space<vmem>>, %arg7: memref<16x128xf32, #tpu.memory_space<vmem>>, %arg8: memref<8x16x128xf32, #tpu.memory_space<vmem>>, %arg9: memref<16x32xf32, #tpu.memory_space<vmem>>, %arg10: memref<16x128xf32, #tpu.memory_space<vmem>>, %arg11: memref<16x32xf32, #tpu.memory_space<vmem>>) attributes {dimension_semantics = [#tpu.dimension_semantics<arbitrary>], iteration_bounds = array<i64: 1>, scalar_prefetch = 0 : i64, scratch_operands = 2 : i64, tpu.core_type = #tpu.core_type<tc>, window_params = [{pipeline_mode = #tpu.pipeline_mode<synchronous>, transform_indices = @transform_0, window_bounds = array<i64: 16, 128>}, {pipeline_mode = #tpu.pipeline_mode<synchronous>, transform_indices = @transform_1, window_bounds = array<i64: 16, 32>}, {pipeline_mode = #tpu.pipeline_mode<synchronous>, transform_indices = @transform_2, window_bounds = array<i64: 128, 128>}, {pipeline_mode = #tpu.pipeline_mode<synchronous>, transform_indices = @transform_3, window_bounds = array<i64: 32, 128>}, {pipeline_mode = #tpu.pipeline_mode<synchronous>, transform_indices = @transform_4, window_bounds = array<i64: 32, 128>}, {pipeline_mode = #tpu.pipeline_mode<synchronous>, transform_indices = @transform_5, window_bounds = array<i64: 16, 128>}, {pipeline_mode = #tpu.pipeline_mode<synchronous>, transform_indices = @transform_6, window_bounds = array<i64: 16, 128>}, {transform_indices = @transform_7, window_bounds = array<i64: 8, 16, 128>}, {pipeline_mode = #tpu.pipeline_mode<synchronous>, transform_indices = @transform_8, window_bounds = array<i64: 16, 32>}]} {
    %c0_i32 = arith.constant 0 : i32
    %0 = arith.cmpi eq, %arg0, %c0_i32 : i32
    %1 = arith.extui %0 : i1 to i32
    %c0_i32_0 = arith.constant 0 : i32
    %2 = arith.cmpi ne, %1, %c0_i32_0 : i32
    scf.if %2 {
      %c0_118 = arith.constant 0 : index
      %c0_119 = arith.constant 0 : index
      %290 = vector.load %arg1[%c0_118, %c0_119] : memref<16x128xf32, #tpu.memory_space<vmem>>, vector<16x128xf32>
      %c0_120 = arith.constant 0 : index
      %c0_121 = arith.constant 0 : index
      %291 = vector.load %arg10[%c0_120, %c0_121] : memref<16x128xf32, #tpu.memory_space<vmem>>, vector<16x128xf32>
      tpu.vector_store %arg10[%c0_120, %c0_121], %290 {strides = array<i32>} : memref<16x128xf32, #tpu.memory_space<vmem>>, vector<16x128xf32>,
      %c0_122 = arith.constant 0 : index
      %c0_123 = arith.constant 0 : index
      %292 = vector.load %arg2[%c0_122, %c0_123] : memref<16x32xf32, #tpu.memory_space<vmem>>, vector<16x32xf32>
      %c0_124 = arith.constant 0 : index
      %c0_125 = arith.constant 0 : index
      %293 = vector.load %arg11[%c0_124, %c0_125] : memref<16x32xf32, #tpu.memory_space<vmem>>, vector<16x32xf32>
      tpu.vector_store %arg11[%c0_124, %c0_125], %292 {strides = array<i32>} : memref<16x32xf32, #tpu.memory_space<vmem>>, vector<16x32xf32>,
    } else {
    }
    %c0 = arith.constant 0 : index
    %c0_1 = arith.constant 0 : index
    %3 = vector.load %arg6[%c0, %c0_1] : memref<16x128xf32, #tpu.memory_space<vmem>>, vector<16x128xf32>
    %c0_2 = arith.constant 0 : index
    %c0_3 = arith.constant 0 : index
    %4 = vector.load %arg7[%c0_2, %c0_3] : memref<16x128xf32, #tpu.memory_space<vmem>>, vector<16x128xf32>
    %c0_4 = arith.constant 0 : index
    %c0_5 = arith.constant 0 : index
    %5 = vector.load %arg10[%c0_4, %c0_5] : memref<16x128xf32, #tpu.memory_space<vmem>>, vector<16x128xf32>
    %c0_6 = arith.constant 0 : index
    %c0_7 = arith.constant 0 : index
    %6 = vector.load %arg11[%c0_6, %c0_7] : memref<16x32xf32, #tpu.memory_space<vmem>>, vector<16x32xf32>
    %c0_i32_8 = arith.constant 0 : i32
    %7 = arith.truncf %6 : vector<16x32xf32> to vector<16x32xbf16>
    %c0_9 = arith.constant 0 : index
    %c0_10 = arith.constant 0 : index
    %8 = vector.load %arg4[%c0_9, %c0_10] : memref<32x128xbf16, #tpu.memory_space<vmem>>, vector<32x128xbf16>
    %cst = arith.constant dense<0.000000e+00> : vector<16x128xf32>
    %9 = tpu.matmul %7, %8, %cst {dimension_numbers = #tpu.dot_dimension_numbers<[1], [0], [0], [1], [0, 0, 1, 1], [], []>} : vector<16x32xbf16>, vector<32x128xbf16>, vector<16x128xf32> -> vector<16x128xf32>
    %10 = arith.truncf %5 : vector<16x128xf32> to vector<16x128xbf16>
    %c0_11 = arith.constant 0 : index
    %c0_12 = arith.constant 0 : index
    %11 = vector.load %arg3[%c0_11, %c0_12] : memref<128x128xbf16, #tpu.memory_space<vmem>>, vector<128x128xbf16>
    %cst_13 = arith.constant dense<0.000000e+00> : vector<16x128xf32>
    %12 = tpu.matmul %10, %11, %cst_13 {dimension_numbers = #tpu.dot_dimension_numbers<[1], [0], [0], [1], [0, 0, 1, 1], [], []>} : vector<16x128xbf16>, vector<128x128xbf16>, vector<16x128xf32> -> vector<16x128xf32>
    %13 = arith.addf %9, %12 : vector<16x128xf32>
    %14 = arith.addf %13, %3 : vector<16x128xf32>
    %15 = vector.extract_strided_slice %14 {offsets = [0, 0], sizes = [16, 64], strides = [1, 1]} : vector<16x128xf32> to vector<16x64xf32>
    %16 = arith.negf %15 : vector<16x64xf32>
    %17 = math.exp %16 : vector<16x64xf32>
    %cst_14 = arith.constant 1.000000e+00 : f32
    %18 = vector.broadcast %cst_14 : f32 to vector<16x64xf32>
    %19 = arith.addf %18, %17 : vector<16x64xf32>
    %20 = arith.divf %18, %19 : vector<16x64xf32>
    %21 = vector.extract_strided_slice %20 {offsets = [0, 0], sizes = [16, 32], strides = [1, 1]} : vector<16x64xf32> to vector<16x32xf32>
    %22 = vector.extract_strided_slice %20 {offsets = [0, 32], sizes = [16, 32], strides = [1, 1]} : vector<16x64xf32> to vector<16x32xf32>
    %23 = vector.extract_strided_slice %14 {offsets = [0, 64], sizes = [16, 32], strides = [1, 1]} : vector<16x128xf32> to vector<16x32xf32>
    %24 = vector.extract_strided_slice %14 {offsets = [0, 96], sizes = [16, 32], strides = [1, 1]} : vector<16x128xf32> to vector<16x32xf32>
    %25 = arith.mulf %21, %24 : vector<16x32xf32>
    %26 = arith.addf %23, %25 : vector<16x32xf32>
    %27 = math.tanh %26 : vector<16x32xf32>
    %cst_15 = arith.constant 1.000000e+00 : f32
    %28 = vector.broadcast %cst_15 : f32 to vector<16x32xf32>
    %29 = arith.subf %28, %22 : vector<16x32xf32>
    %30 = arith.mulf %29, %27 : vector<16x32xf32>
    %31 = arith.mulf %22, %6 : vector<16x32xf32>
    %32 = arith.addf %30, %31 : vector<16x32xf32>
    %33 = arith.truncf %32 : vector<16x32xf32> to vector<16x32xbf16>
    %c0_16 = arith.constant 0 : index
    %c0_17 = arith.constant 0 : index
    %34 = vector.load %arg5[%c0_16, %c0_17] : memref<32x128xbf16, #tpu.memory_space<vmem>>, vector<32x128xbf16>
    %cst_18 = arith.constant dense<0.000000e+00> : vector<16x128xf32>
    %35 = tpu.matmul %33, %34, %cst_18 {dimension_numbers = #tpu.dot_dimension_numbers<[1], [0], [0], [1], [0, 0, 1, 1], [], []>} : vector<16x32xbf16>, vector<32x128xbf16>, vector<16x128xf32> -> vector<16x128xf32>
    %36 = arith.addf %35, %4 : vector<16x128xf32>
    %37 = arith.index_cast %c0_i32_8 : i32 to index
    %c0_19 = arith.constant 0 : index
    %c0_20 = arith.constant 0 : index
    %38 = vector.load %arg8[%37, %c0_19, %c0_20] : memref<8x16x128xf32, #tpu.memory_space<vmem>>, vector<1x16x128xf32>
    %39 = vector.shape_cast %38 : vector<1x16x128xf32> to vector<16x128xf32>
    %40 = vector.shape_cast %36 : vector<16x128xf32> to vector<1x16x128xf32>
    tpu.vector_store %arg8[%37, %c0_19, %c0_20], %40 {strides = array<i32>} : memref<8x16x128xf32, #tpu.memory_space<vmem>>, vector<1x16x128xf32>,
    %41 = math.tanh %36 : vector<16x128xf32>
    %c1_i32 = arith.constant 1 : i32
    %42 = arith.truncf %32 : vector<16x32xf32> to vector<16x32xbf16>
    %c0_21 = arith.constant 0 : index
    %c0_22 = arith.constant 0 : index
    %43 = vector.load %arg4[%c0_21, %c0_22] : memref<32x128xbf16, #tpu.memory_space<vmem>>, vector<32x128xbf16>
    %cst_23 = arith.constant dense<0.000000e+00> : vector<16x128xf32>
    %44 = tpu.matmul %42, %43, %cst_23 {dimension_numbers = #tpu.dot_dimension_numbers<[1], [0], [0], [1], [0, 0, 1, 1], [], []>} : vector<16x32xbf16>, vector<32x128xbf16>, vector<16x128xf32> -> vector<16x128xf32>
    %45 = arith.truncf %41 : vector<16x128xf32> to vector<16x128xbf16>
    %c0_24 = arith.constant 0 : index
    %c0_25 = arith.constant 0 : index
    %46 = vector.load %arg3[%c0_24, %c0_25] : memref<128x128xbf16, #tpu.memory_space<vmem>>, vector<128x128xbf16>
    %cst_26 = arith.constant dense<0.000000e+00> : vector<16x128xf32>
    %47 = tpu.matmul %45, %46, %cst_26 {dimension_numbers = #tpu.dot_dimension_numbers<[1], [0], [0], [1], [0, 0, 1, 1], [], []>} : vector<16x128xbf16>, vector<128x128xbf16>, vector<16x128xf32> -> vector<16x128xf32>
    %48 = arith.addf %44, %47 : vector<16x128xf32>
    %49 = arith.addf %48, %3 : vector<16x128xf32>
    %50 = vector.extract_strided_slice %49 {offsets = [0, 0], sizes = [16, 64], strides = [1, 1]} : vector<16x128xf32> to vector<16x64xf32>
    %51 = arith.negf %50 : vector<16x64xf32>
    %52 = math.exp %51 : vector<16x64xf32>
    %cst_27 = arith.constant 1.000000e+00 : f32
    %53 = vector.broadcast %cst_27 : f32 to vector<16x64xf32>
    %54 = arith.addf %53, %52 : vector<16x64xf32>
    %55 = arith.divf %53, %54 : vector<16x64xf32>
    %56 = vector.extract_strided_slice %55 {offsets = [0, 0], sizes = [16, 32], strides = [1, 1]} : vector<16x64xf32> to vector<16x32xf32>
    %57 = vector.extract_strided_slice %55 {offsets = [0, 32], sizes = [16, 32], strides = [1, 1]} : vector<16x64xf32> to vector<16x32xf32>
    %58 = vector.extract_strided_slice %49 {offsets = [0, 64], sizes = [16, 32], strides = [1, 1]} : vector<16x128xf32> to vector<16x32xf32>
    %59 = vector.extract_strided_slice %49 {offsets = [0, 96], sizes = [16, 32], strides = [1, 1]} : vector<16x128xf32> to vector<16x32xf32>
    %60 = arith.mulf %56, %59 : vector<16x32xf32>
    %61 = arith.addf %58, %60 : vector<16x32xf32>
    %62 = math.tanh %61 : vector<16x32xf32>
    %cst_28 = arith.constant 1.000000e+00 : f32
    %63 = vector.broadcast %cst_28 : f32 to vector<16x32xf32>
    %64 = arith.subf %63, %57 : vector<16x32xf32>
    %65 = arith.mulf %64, %62 : vector<16x32xf32>
    %66 = arith.mulf %57, %32 : vector<16x32xf32>
    %67 = arith.addf %65, %66 : vector<16x32xf32>
    %68 = arith.truncf %67 : vector<16x32xf32> to vector<16x32xbf16>
    %c0_29 = arith.constant 0 : index
    %c0_30 = arith.constant 0 : index
    %69 = vector.load %arg5[%c0_29, %c0_30] : memref<32x128xbf16, #tpu.memory_space<vmem>>, vector<32x128xbf16>
    %cst_31 = arith.constant dense<0.000000e+00> : vector<16x128xf32>
    %70 = tpu.matmul %68, %69, %cst_31 {dimension_numbers = #tpu.dot_dimension_numbers<[1], [0], [0], [1], [0, 0, 1, 1], [], []>} : vector<16x32xbf16>, vector<32x128xbf16>, vector<16x128xf32> -> vector<16x128xf32>
    %71 = arith.addf %70, %4 : vector<16x128xf32>
    %72 = arith.index_cast %c1_i32 : i32 to index
    %c0_32 = arith.constant 0 : index
    %c0_33 = arith.constant 0 : index
    %73 = vector.load %arg8[%72, %c0_32, %c0_33] : memref<8x16x128xf32, #tpu.memory_space<vmem>>, vector<1x16x128xf32>
    %74 = vector.shape_cast %73 : vector<1x16x128xf32> to vector<16x128xf32>
    %75 = vector.shape_cast %71 : vector<16x128xf32> to vector<1x16x128xf32>
    tpu.vector_store %arg8[%72, %c0_32, %c0_33], %75 {strides = array<i32>} : memref<8x16x128xf32, #tpu.memory_space<vmem>>, vector<1x16x128xf32>,
    %76 = math.tanh %71 : vector<16x128xf32>
    %c2_i32 = arith.constant 2 : i32
    %77 = arith.truncf %67 : vector<16x32xf32> to vector<16x32xbf16>
    %c0_34 = arith.constant 0 : index
    %c0_35 = arith.constant 0 : index
    %78 = vector.load %arg4[%c0_34, %c0_35] : memref<32x128xbf16, #tpu.memory_space<vmem>>, vector<32x128xbf16>
    %cst_36 = arith.constant dense<0.000000e+00> : vector<16x128xf32>
    %79 = tpu.matmul %77, %78, %cst_36 {dimension_numbers = #tpu.dot_dimension_numbers<[1], [0], [0], [1], [0, 0, 1, 1], [], []>} : vector<16x32xbf16>, vector<32x128xbf16>, vector<16x128xf32> -> vector<16x128xf32>
    %80 = arith.truncf %76 : vector<16x128xf32> to vector<16x128xbf16>
    %c0_37 = arith.constant 0 : index
    %c0_38 = arith.constant 0 : index
    %81 = vector.load %arg3[%c0_37, %c0_38] : memref<128x128xbf16, #tpu.memory_space<vmem>>, vector<128x128xbf16>
    %cst_39 = arith.constant dense<0.000000e+00> : vector<16x128xf32>
    %82 = tpu.matmul %80, %81, %cst_39 {dimension_numbers = #tpu.dot_dimension_numbers<[1], [0], [0], [1], [0, 0, 1, 1], [], []>} : vector<16x128xbf16>, vector<128x128xbf16>, vector<16x128xf32> -> vector<16x128xf32>
    %83 = arith.addf %79, %82 : vector<16x128xf32>
    %84 = arith.addf %83, %3 : vector<16x128xf32>
    %85 = vector.extract_strided_slice %84 {offsets = [0, 0], sizes = [16, 64], strides = [1, 1]} : vector<16x128xf32> to vector<16x64xf32>
    %86 = arith.negf %85 : vector<16x64xf32>
    %87 = math.exp %86 : vector<16x64xf32>
    %cst_40 = arith.constant 1.000000e+00 : f32
    %88 = vector.broadcast %cst_40 : f32 to vector<16x64xf32>
    %89 = arith.addf %88, %87 : vector<16x64xf32>
    %90 = arith.divf %88, %89 : vector<16x64xf32>
    %91 = vector.extract_strided_slice %90 {offsets = [0, 0], sizes = [16, 32], strides = [1, 1]} : vector<16x64xf32> to vector<16x32xf32>
    %92 = vector.extract_strided_slice %90 {offsets = [0, 32], sizes = [16, 32], strides = [1, 1]} : vector<16x64xf32> to vector<16x32xf32>
    %93 = vector.extract_strided_slice %84 {offsets = [0, 64], sizes = [16, 32], strides = [1, 1]} : vector<16x128xf32> to vector<16x32xf32>
    %94 = vector.extract_strided_slice %84 {offsets = [0, 96], sizes = [16, 32], strides = [1, 1]} : vector<16x128xf32> to vector<16x32xf32>
    %95 = arith.mulf %91, %94 : vector<16x32xf32>
    %96 = arith.addf %93, %95 : vector<16x32xf32>
    %97 = math.tanh %96 : vector<16x32xf32>
    %cst_41 = arith.constant 1.000000e+00 : f32
    %98 = vector.broadcast %cst_41 : f32 to vector<16x32xf32>
    %99 = arith.subf %98, %92 : vector<16x32xf32>
    %100 = arith.mulf %99, %97 : vector<16x32xf32>
    %101 = arith.mulf %92, %67 : vector<16x32xf32>
    %102 = arith.addf %100, %101 : vector<16x32xf32>
    %103 = arith.truncf %102 : vector<16x32xf32> to vector<16x32xbf16>
    %c0_42 = arith.constant 0 : index
    %c0_43 = arith.constant 0 : index
    %104 = vector.load %arg5[%c0_42, %c0_43] : memref<32x128xbf16, #tpu.memory_space<vmem>>, vector<32x128xbf16>
    %cst_44 = arith.constant dense<0.000000e+00> : vector<16x128xf32>
    %105 = tpu.matmul %103, %104, %cst_44 {dimension_numbers = #tpu.dot_dimension_numbers<[1], [0], [0], [1], [0, 0, 1, 1], [], []>} : vector<16x32xbf16>, vector<32x128xbf16>, vector<16x128xf32> -> vector<16x128xf32>
    %106 = arith.addf %105, %4 : vector<16x128xf32>
    %107 = arith.index_cast %c2_i32 : i32 to index
    %c0_45 = arith.constant 0 : index
    %c0_46 = arith.constant 0 : index
    %108 = vector.load %arg8[%107, %c0_45, %c0_46] : memref<8x16x128xf32, #tpu.memory_space<vmem>>, vector<1x16x128xf32>
    %109 = vector.shape_cast %108 : vector<1x16x128xf32> to vector<16x128xf32>
    %110 = vector.shape_cast %106 : vector<16x128xf32> to vector<1x16x128xf32>
    tpu.vector_store %arg8[%107, %c0_45, %c0_46], %110 {strides = array<i32>} : memref<8x16x128xf32, #tpu.memory_space<vmem>>, vector<1x16x128xf32>,
    %111 = math.tanh %106 : vector<16x128xf32>
    %c3_i32 = arith.constant 3 : i32
    %112 = arith.truncf %102 : vector<16x32xf32> to vector<16x32xbf16>
    %c0_47 = arith.constant 0 : index
    %c0_48 = arith.constant 0 : index
    %113 = vector.load %arg4[%c0_47, %c0_48] : memref<32x128xbf16, #tpu.memory_space<vmem>>, vector<32x128xbf16>
    %cst_49 = arith.constant dense<0.000000e+00> : vector<16x128xf32>
    %114 = tpu.matmul %112, %113, %cst_49 {dimension_numbers = #tpu.dot_dimension_numbers<[1], [0], [0], [1], [0, 0, 1, 1], [], []>} : vector<16x32xbf16>, vector<32x128xbf16>, vector<16x128xf32> -> vector<16x128xf32>
    %115 = arith.truncf %111 : vector<16x128xf32> to vector<16x128xbf16>
    %c0_50 = arith.constant 0 : index
    %c0_51 = arith.constant 0 : index
    %116 = vector.load %arg3[%c0_50, %c0_51] : memref<128x128xbf16, #tpu.memory_space<vmem>>, vector<128x128xbf16>
    %cst_52 = arith.constant dense<0.000000e+00> : vector<16x128xf32>
    %117 = tpu.matmul %115, %116, %cst_52 {dimension_numbers = #tpu.dot_dimension_numbers<[1], [0], [0], [1], [0, 0, 1, 1], [], []>} : vector<16x128xbf16>, vector<128x128xbf16>, vector<16x128xf32> -> vector<16x128xf32>
    %118 = arith.addf %114, %117 : vector<16x128xf32>
    %119 = arith.addf %118, %3 : vector<16x128xf32>
    %120 = vector.extract_strided_slice %119 {offsets = [0, 0], sizes = [16, 64], strides = [1, 1]} : vector<16x128xf32> to vector<16x64xf32>
    %121 = arith.negf %120 : vector<16x64xf32>
    %122 = math.exp %121 : vector<16x64xf32>
    %cst_53 = arith.constant 1.000000e+00 : f32
    %123 = vector.broadcast %cst_53 : f32 to vector<16x64xf32>
    %124 = arith.addf %123, %122 : vector<16x64xf32>
    %125 = arith.divf %123, %124 : vector<16x64xf32>
    %126 = vector.extract_strided_slice %125 {offsets = [0, 0], sizes = [16, 32], strides = [1, 1]} : vector<16x64xf32> to vector<16x32xf32>
    %127 = vector.extract_strided_slice %125 {offsets = [0, 32], sizes = [16, 32], strides = [1, 1]} : vector<16x64xf32> to vector<16x32xf32>
    %128 = vector.extract_strided_slice %119 {offsets = [0, 64], sizes = [16, 32], strides = [1, 1]} : vector<16x128xf32> to vector<16x32xf32>
    %129 = vector.extract_strided_slice %119 {offsets = [0, 96], sizes = [16, 32], strides = [1, 1]} : vector<16x128xf32> to vector<16x32xf32>
    %130 = arith.mulf %126, %129 : vector<16x32xf32>
    %131 = arith.addf %128, %130 : vector<16x32xf32>
    %132 = math.tanh %131 : vector<16x32xf32>
    %cst_54 = arith.constant 1.000000e+00 : f32
    %133 = vector.broadcast %cst_54 : f32 to vector<16x32xf32>
    %134 = arith.subf %133, %127 : vector<16x32xf32>
    %135 = arith.mulf %134, %132 : vector<16x32xf32>
    %136 = arith.mulf %127, %102 : vector<16x32xf32>
    %137 = arith.addf %135, %136 : vector<16x32xf32>
    %138 = arith.truncf %137 : vector<16x32xf32> to vector<16x32xbf16>
    %c0_55 = arith.constant 0 : index
    %c0_56 = arith.constant 0 : index
    %139 = vector.load %arg5[%c0_55, %c0_56] : memref<32x128xbf16, #tpu.memory_space<vmem>>, vector<32x128xbf16>
    %cst_57 = arith.constant dense<0.000000e+00> : vector<16x128xf32>
    %140 = tpu.matmul %138, %139, %cst_57 {dimension_numbers = #tpu.dot_dimension_numbers<[1], [0], [0], [1], [0, 0, 1, 1], [], []>} : vector<16x32xbf16>, vector<32x128xbf16>, vector<16x128xf32> -> vector<16x128xf32>
    %141 = arith.addf %140, %4 : vector<16x128xf32>
    %142 = arith.index_cast %c3_i32 : i32 to index
    %c0_58 = arith.constant 0 : index
    %c0_59 = arith.constant 0 : index
    %143 = vector.load %arg8[%142, %c0_58, %c0_59] : memref<8x16x128xf32, #tpu.memory_space<vmem>>, vector<1x16x128xf32>
    %144 = vector.shape_cast %143 : vector<1x16x128xf32> to vector<16x128xf32>
    %145 = vector.shape_cast %141 : vector<16x128xf32> to vector<1x16x128xf32>
    tpu.vector_store %arg8[%142, %c0_58, %c0_59], %145 {strides = array<i32>} : memref<8x16x128xf32, #tpu.memory_space<vmem>>, vector<1x16x128xf32>,
    %146 = math.tanh %141 : vector<16x128xf32>
    %c4_i32 = arith.constant 4 : i32
    %147 = arith.truncf %137 : vector<16x32xf32> to vector<16x32xbf16>
    %c0_60 = arith.constant 0 : index
    %c0_61 = arith.constant 0 : index
    %148 = vector.load %arg4[%c0_60, %c0_61] : memref<32x128xbf16, #tpu.memory_space<vmem>>, vector<32x128xbf16>
    %cst_62 = arith.constant dense<0.000000e+00> : vector<16x128xf32>
    %149 = tpu.matmul %147, %148, %cst_62 {dimension_numbers = #tpu.dot_dimension_numbers<[1], [0], [0], [1], [0, 0, 1, 1], [], []>} : vector<16x32xbf16>, vector<32x128xbf16>, vector<16x128xf32> -> vector<16x128xf32>
    %150 = arith.truncf %146 : vector<16x128xf32> to vector<16x128xbf16>
    %c0_63 = arith.constant 0 : index
    %c0_64 = arith.constant 0 : index
    %151 = vector.load %arg3[%c0_63, %c0_64] : memref<128x128xbf16, #tpu.memory_space<vmem>>, vector<128x128xbf16>
    %cst_65 = arith.constant dense<0.000000e+00> : vector<16x128xf32>
    %152 = tpu.matmul %150, %151, %cst_65 {dimension_numbers = #tpu.dot_dimension_numbers<[1], [0], [0], [1], [0, 0, 1, 1], [], []>} : vector<16x128xbf16>, vector<128x128xbf16>, vector<16x128xf32> -> vector<16x128xf32>
    %153 = arith.addf %149, %152 : vector<16x128xf32>
    %154 = arith.addf %153, %3 : vector<16x128xf32>
    %155 = vector.extract_strided_slice %154 {offsets = [0, 0], sizes = [16, 64], strides = [1, 1]} : vector<16x128xf32> to vector<16x64xf32>
    %156 = arith.negf %155 : vector<16x64xf32>
    %157 = math.exp %156 : vector<16x64xf32>
    %cst_66 = arith.constant 1.000000e+00 : f32
    %158 = vector.broadcast %cst_66 : f32 to vector<16x64xf32>
    %159 = arith.addf %158, %157 : vector<16x64xf32>
    %160 = arith.divf %158, %159 : vector<16x64xf32>
    %161 = vector.extract_strided_slice %160 {offsets = [0, 0], sizes = [16, 32], strides = [1, 1]} : vector<16x64xf32> to vector<16x32xf32>
    %162 = vector.extract_strided_slice %160 {offsets = [0, 32], sizes = [16, 32], strides = [1, 1]} : vector<16x64xf32> to vector<16x32xf32>
    %163 = vector.extract_strided_slice %154 {offsets = [0, 64], sizes = [16, 32], strides = [1, 1]} : vector<16x128xf32> to vector<16x32xf32>
    %164 = vector.extract_strided_slice %154 {offsets = [0, 96], sizes = [16, 32], strides = [1, 1]} : vector<16x128xf32> to vector<16x32xf32>
    %165 = arith.mulf %161, %164 : vector<16x32xf32>
    %166 = arith.addf %163, %165 : vector<16x32xf32>
    %167 = math.tanh %166 : vector<16x32xf32>
    %cst_67 = arith.constant 1.000000e+00 : f32
    %168 = vector.broadcast %cst_67 : f32 to vector<16x32xf32>
    %169 = arith.subf %168, %162 : vector<16x32xf32>
    %170 = arith.mulf %169, %167 : vector<16x32xf32>
    %171 = arith.mulf %162, %137 : vector<16x32xf32>
    %172 = arith.addf %170, %171 : vector<16x32xf32>
    %173 = arith.truncf %172 : vector<16x32xf32> to vector<16x32xbf16>
    %c0_68 = arith.constant 0 : index
    %c0_69 = arith.constant 0 : index
    %174 = vector.load %arg5[%c0_68, %c0_69] : memref<32x128xbf16, #tpu.memory_space<vmem>>, vector<32x128xbf16>
    %cst_70 = arith.constant dense<0.000000e+00> : vector<16x128xf32>
    %175 = tpu.matmul %173, %174, %cst_70 {dimension_numbers = #tpu.dot_dimension_numbers<[1], [0], [0], [1], [0, 0, 1, 1], [], []>} : vector<16x32xbf16>, vector<32x128xbf16>, vector<16x128xf32> -> vector<16x128xf32>
    %176 = arith.addf %175, %4 : vector<16x128xf32>
    %177 = arith.index_cast %c4_i32 : i32 to index
    %c0_71 = arith.constant 0 : index
    %c0_72 = arith.constant 0 : index
    %178 = vector.load %arg8[%177, %c0_71, %c0_72] : memref<8x16x128xf32, #tpu.memory_space<vmem>>, vector<1x16x128xf32>
    %179 = vector.shape_cast %178 : vector<1x16x128xf32> to vector<16x128xf32>
    %180 = vector.shape_cast %176 : vector<16x128xf32> to vector<1x16x128xf32>
    tpu.vector_store %arg8[%177, %c0_71, %c0_72], %180 {strides = array<i32>} : memref<8x16x128xf32, #tpu.memory_space<vmem>>, vector<1x16x128xf32>,
    %181 = math.tanh %176 : vector<16x128xf32>
    %c5_i32 = arith.constant 5 : i32
    %182 = arith.truncf %172 : vector<16x32xf32> to vector<16x32xbf16>
    %c0_73 = arith.constant 0 : index
    %c0_74 = arith.constant 0 : index
    %183 = vector.load %arg4[%c0_73, %c0_74] : memref<32x128xbf16, #tpu.memory_space<vmem>>, vector<32x128xbf16>
    %cst_75 = arith.constant dense<0.000000e+00> : vector<16x128xf32>
    %184 = tpu.matmul %182, %183, %cst_75 {dimension_numbers = #tpu.dot_dimension_numbers<[1], [0], [0], [1], [0, 0, 1, 1], [], []>} : vector<16x32xbf16>, vector<32x128xbf16>, vector<16x128xf32> -> vector<16x128xf32>
    %185 = arith.truncf %181 : vector<16x128xf32> to vector<16x128xbf16>
    %c0_76 = arith.constant 0 : index
    %c0_77 = arith.constant 0 : index
    %186 = vector.load %arg3[%c0_76, %c0_77] : memref<128x128xbf16, #tpu.memory_space<vmem>>, vector<128x128xbf16>
    %cst_78 = arith.constant dense<0.000000e+00> : vector<16x128xf32>
    %187 = tpu.matmul %185, %186, %cst_78 {dimension_numbers = #tpu.dot_dimension_numbers<[1], [0], [0], [1], [0, 0, 1, 1], [], []>} : vector<16x128xbf16>, vector<128x128xbf16>, vector<16x128xf32> -> vector<16x128xf32>
    %188 = arith.addf %184, %187 : vector<16x128xf32>
    %189 = arith.addf %188, %3 : vector<16x128xf32>
    %190 = vector.extract_strided_slice %189 {offsets = [0, 0], sizes = [16, 64], strides = [1, 1]} : vector<16x128xf32> to vector<16x64xf32>
    %191 = arith.negf %190 : vector<16x64xf32>
    %192 = math.exp %191 : vector<16x64xf32>
    %cst_79 = arith.constant 1.000000e+00 : f32
    %193 = vector.broadcast %cst_79 : f32 to vector<16x64xf32>
    %194 = arith.addf %193, %192 : vector<16x64xf32>
    %195 = arith.divf %193, %194 : vector<16x64xf32>
    %196 = vector.extract_strided_slice %195 {offsets = [0, 0], sizes = [16, 32], strides = [1, 1]} : vector<16x64xf32> to vector<16x32xf32>
    %197 = vector.extract_strided_slice %195 {offsets = [0, 32], sizes = [16, 32], strides = [1, 1]} : vector<16x64xf32> to vector<16x32xf32>
    %198 = vector.extract_strided_slice %189 {offsets = [0, 64], sizes = [16, 32], strides = [1, 1]} : vector<16x128xf32> to vector<16x32xf32>
    %199 = vector.extract_strided_slice %189 {offsets = [0, 96], sizes = [16, 32], strides = [1, 1]} : vector<16x128xf32> to vector<16x32xf32>
    %200 = arith.mulf %196, %199 : vector<16x32xf32>
    %201 = arith.addf %198, %200 : vector<16x32xf32>
    %202 = math.tanh %201 : vector<16x32xf32>
    %cst_80 = arith.constant 1.000000e+00 : f32
    %203 = vector.broadcast %cst_80 : f32 to vector<16x32xf32>
    %204 = arith.subf %203, %197 : vector<16x32xf32>
    %205 = arith.mulf %204, %202 : vector<16x32xf32>
    %206 = arith.mulf %197, %172 : vector<16x32xf32>
    %207 = arith.addf %205, %206 : vector<16x32xf32>
    %208 = arith.truncf %207 : vector<16x32xf32> to vector<16x32xbf16>
    %c0_81 = arith.constant 0 : index
    %c0_82 = arith.constant 0 : index
    %209 = vector.load %arg5[%c0_81, %c0_82] : memref<32x128xbf16, #tpu.memory_space<vmem>>, vector<32x128xbf16>
    %cst_83 = arith.constant dense<0.000000e+00> : vector<16x128xf32>
    %210 = tpu.matmul %208, %209, %cst_83 {dimension_numbers = #tpu.dot_dimension_numbers<[1], [0], [0], [1], [0, 0, 1, 1], [], []>} : vector<16x32xbf16>, vector<32x128xbf16>, vector<16x128xf32> -> vector<16x128xf32>
    %211 = arith.addf %210, %4 : vector<16x128xf32>
    %212 = arith.index_cast %c5_i32 : i32 to index
    %c0_84 = arith.constant 0 : index
    %c0_85 = arith.constant 0 : index
    %213 = vector.load %arg8[%212, %c0_84, %c0_85] : memref<8x16x128xf32, #tpu.memory_space<vmem>>, vector<1x16x128xf32>
    %214 = vector.shape_cast %213 : vector<1x16x128xf32> to vector<16x128xf32>
    %215 = vector.shape_cast %211 : vector<16x128xf32> to vector<1x16x128xf32>
    tpu.vector_store %arg8[%212, %c0_84, %c0_85], %215 {strides = array<i32>} : memref<8x16x128xf32, #tpu.memory_space<vmem>>, vector<1x16x128xf32>,
    %216 = math.tanh %211 : vector<16x128xf32>
    %c6_i32 = arith.constant 6 : i32
    %217 = arith.truncf %207 : vector<16x32xf32> to vector<16x32xbf16>
    %c0_86 = arith.constant 0 : index
    %c0_87 = arith.constant 0 : index
    %218 = vector.load %arg4[%c0_86, %c0_87] : memref<32x128xbf16, #tpu.memory_space<vmem>>, vector<32x128xbf16>
    %cst_88 = arith.constant dense<0.000000e+00> : vector<16x128xf32>
    %219 = tpu.matmul %217, %218, %cst_88 {dimension_numbers = #tpu.dot_dimension_numbers<[1], [0], [0], [1], [0, 0, 1, 1], [], []>} : vector<16x32xbf16>, vector<32x128xbf16>, vector<16x128xf32> -> vector<16x128xf32>
    %220 = arith.truncf %216 : vector<16x128xf32> to vector<16x128xbf16>
    %c0_89 = arith.constant 0 : index
    %c0_90 = arith.constant 0 : index
    %221 = vector.load %arg3[%c0_89, %c0_90] : memref<128x128xbf16, #tpu.memory_space<vmem>>, vector<128x128xbf16>
    %cst_91 = arith.constant dense<0.000000e+00> : vector<16x128xf32>
    %222 = tpu.matmul %220, %221, %cst_91 {dimension_numbers = #tpu.dot_dimension_numbers<[1], [0], [0], [1], [0, 0, 1, 1], [], []>} : vector<16x128xbf16>, vector<128x128xbf16>, vector<16x128xf32> -> vector<16x128xf32>
    %223 = arith.addf %219, %222 : vector<16x128xf32>
    %224 = arith.addf %223, %3 : vector<16x128xf32>
    %225 = vector.extract_strided_slice %224 {offsets = [0, 0], sizes = [16, 64], strides = [1, 1]} : vector<16x128xf32> to vector<16x64xf32>
    %226 = arith.negf %225 : vector<16x64xf32>
    %227 = math.exp %226 : vector<16x64xf32>
    %cst_92 = arith.constant 1.000000e+00 : f32
    %228 = vector.broadcast %cst_92 : f32 to vector<16x64xf32>
    %229 = arith.addf %228, %227 : vector<16x64xf32>
    %230 = arith.divf %228, %229 : vector<16x64xf32>
    %231 = vector.extract_strided_slice %230 {offsets = [0, 0], sizes = [16, 32], strides = [1, 1]} : vector<16x64xf32> to vector<16x32xf32>
    %232 = vector.extract_strided_slice %230 {offsets = [0, 32], sizes = [16, 32], strides = [1, 1]} : vector<16x64xf32> to vector<16x32xf32>
    %233 = vector.extract_strided_slice %224 {offsets = [0, 64], sizes = [16, 32], strides = [1, 1]} : vector<16x128xf32> to vector<16x32xf32>
    %234 = vector.extract_strided_slice %224 {offsets = [0, 96], sizes = [16, 32], strides = [1, 1]} : vector<16x128xf32> to vector<16x32xf32>
    %235 = arith.mulf %231, %234 : vector<16x32xf32>
    %236 = arith.addf %233, %235 : vector<16x32xf32>
    %237 = math.tanh %236 : vector<16x32xf32>
    %cst_93 = arith.constant 1.000000e+00 : f32
    %238 = vector.broadcast %cst_93 : f32 to vector<16x32xf32>
    %239 = arith.subf %238, %232 : vector<16x32xf32>
    %240 = arith.mulf %239, %237 : vector<16x32xf32>
    %241 = arith.mulf %232, %207 : vector<16x32xf32>
    %242 = arith.addf %240, %241 : vector<16x32xf32>
    %243 = arith.truncf %242 : vector<16x32xf32> to vector<16x32xbf16>
    %c0_94 = arith.constant 0 : index
    %c0_95 = arith.constant 0 : index
    %244 = vector.load %arg5[%c0_94, %c0_95] : memref<32x128xbf16, #tpu.memory_space<vmem>>, vector<32x128xbf16>
    %cst_96 = arith.constant dense<0.000000e+00> : vector<16x128xf32>
    %245 = tpu.matmul %243, %244, %cst_96 {dimension_numbers = #tpu.dot_dimension_numbers<[1], [0], [0], [1], [0, 0, 1, 1], [], []>} : vector<16x32xbf16>, vector<32x128xbf16>, vector<16x128xf32> -> vector<16x128xf32>
    %246 = arith.addf %245, %4 : vector<16x128xf32>
    %247 = arith.index_cast %c6_i32 : i32 to index
    %c0_97 = arith.constant 0 : index
    %c0_98 = arith.constant 0 : index
    %248 = vector.load %arg8[%247, %c0_97, %c0_98] : memref<8x16x128xf32, #tpu.memory_space<vmem>>, vector<1x16x128xf32>
    %249 = vector.shape_cast %248 : vector<1x16x128xf32> to vector<16x128xf32>
    %250 = vector.shape_cast %246 : vector<16x128xf32> to vector<1x16x128xf32>
    tpu.vector_store %arg8[%247, %c0_97, %c0_98], %250 {strides = array<i32>} : memref<8x16x128xf32, #tpu.memory_space<vmem>>, vector<1x16x128xf32>,
    %251 = math.tanh %246 : vector<16x128xf32>
    %c7_i32 = arith.constant 7 : i32
    %252 = arith.truncf %242 : vector<16x32xf32> to vector<16x32xbf16>
    %c0_99 = arith.constant 0 : index
    %c0_100 = arith.constant 0 : index
    %253 = vector.load %arg4[%c0_99, %c0_100] : memref<32x128xbf16, #tpu.memory_space<vmem>>, vector<32x128xbf16>
    %cst_101 = arith.constant dense<0.000000e+00> : vector<16x128xf32>
    %254 = tpu.matmul %252, %253, %cst_101 {dimension_numbers = #tpu.dot_dimension_numbers<[1], [0], [0], [1], [0, 0, 1, 1], [], []>} : vector<16x32xbf16>, vector<32x128xbf16>, vector<16x128xf32> -> vector<16x128xf32>
    %255 = arith.truncf %251 : vector<16x128xf32> to vector<16x128xbf16>
    %c0_102 = arith.constant 0 : index
    %c0_103 = arith.constant 0 : index
    %256 = vector.load %arg3[%c0_102, %c0_103] : memref<128x128xbf16, #tpu.memory_space<vmem>>, vector<128x128xbf16>
    %cst_104 = arith.constant dense<0.000000e+00> : vector<16x128xf32>
    %257 = tpu.matmul %255, %256, %cst_104 {dimension_numbers = #tpu.dot_dimension_numbers<[1], [0], [0], [1], [0, 0, 1, 1], [], []>} : vector<16x128xbf16>, vector<128x128xbf16>, vector<16x128xf32> -> vector<16x128xf32>
    %258 = arith.addf %254, %257 : vector<16x128xf32>
    %259 = arith.addf %258, %3 : vector<16x128xf32>
    %260 = vector.extract_strided_slice %259 {offsets = [0, 0], sizes = [16, 64], strides = [1, 1]} : vector<16x128xf32> to vector<16x64xf32>
    %261 = arith.negf %260 : vector<16x64xf32>
    %262 = math.exp %261 : vector<16x64xf32>
    %cst_105 = arith.constant 1.000000e+00 : f32
    %263 = vector.broadcast %cst_105 : f32 to vector<16x64xf32>
    %264 = arith.addf %263, %262 : vector<16x64xf32>
    %265 = arith.divf %263, %264 : vector<16x64xf32>
    %266 = vector.extract_strided_slice %265 {offsets = [0, 0], sizes = [16, 32], strides = [1, 1]} : vector<16x64xf32> to vector<16x32xf32>
    %267 = vector.extract_strided_slice %265 {offsets = [0, 32], sizes = [16, 32], strides = [1, 1]} : vector<16x64xf32> to vector<16x32xf32>
    %268 = vector.extract_strided_slice %259 {offsets = [0, 64], sizes = [16, 32], strides = [1, 1]} : vector<16x128xf32> to vector<16x32xf32>
    %269 = vector.extract_strided_slice %259 {offsets = [0, 96], sizes = [16, 32], strides = [1, 1]} : vector<16x128xf32> to vector<16x32xf32>
    %270 = arith.mulf %266, %269 : vector<16x32xf32>
    %271 = arith.addf %268, %270 : vector<16x32xf32>
    %272 = math.tanh %271 : vector<16x32xf32>
    %cst_106 = arith.constant 1.000000e+00 : f32
    %273 = vector.broadcast %cst_106 : f32 to vector<16x32xf32>
    %274 = arith.subf %273, %267 : vector<16x32xf32>
    %275 = arith.mulf %274, %272 : vector<16x32xf32>
    %276 = arith.mulf %267, %242 : vector<16x32xf32>
    %277 = arith.addf %275, %276 : vector<16x32xf32>
    %278 = arith.truncf %277 : vector<16x32xf32> to vector<16x32xbf16>
    %c0_107 = arith.constant 0 : index
    %c0_108 = arith.constant 0 : index
    %279 = vector.load %arg5[%c0_107, %c0_108] : memref<32x128xbf16, #tpu.memory_space<vmem>>, vector<32x128xbf16>
    %cst_109 = arith.constant dense<0.000000e+00> : vector<16x128xf32>
    %280 = tpu.matmul %278, %279, %cst_109 {dimension_numbers = #tpu.dot_dimension_numbers<[1], [0], [0], [1], [0, 0, 1, 1], [], []>} : vector<16x32xbf16>, vector<32x128xbf16>, vector<16x128xf32> -> vector<16x128xf32>
    %281 = arith.addf %280, %4 : vector<16x128xf32>
    %282 = arith.index_cast %c7_i32 : i32 to index
    %c0_110 = arith.constant 0 : index
    %c0_111 = arith.constant 0 : index
    %283 = vector.load %arg8[%282, %c0_110, %c0_111] : memref<8x16x128xf32, #tpu.memory_space<vmem>>, vector<1x16x128xf32>
    %284 = vector.shape_cast %283 : vector<1x16x128xf32> to vector<16x128xf32>
    %285 = vector.shape_cast %281 : vector<16x128xf32> to vector<1x16x128xf32>
    tpu.vector_store %arg8[%282, %c0_110, %c0_111], %285 {strides = array<i32>} : memref<8x16x128xf32, #tpu.memory_space<vmem>>, vector<1x16x128xf32>,
    %286 = math.tanh %281 : vector<16x128xf32>
    %c8_i32 = arith.constant 8 : i32
    %c0_112 = arith.constant 0 : index
    %c0_113 = arith.constant 0 : index
    %287 = vector.load %arg10[%c0_112, %c0_113] : memref<16x128xf32, #tpu.memory_space<vmem>>, vector<16x128xf32>
    tpu.vector_store %arg10[%c0_112, %c0_113], %286 {strides = array<i32>} : memref<16x128xf32, #tpu.memory_space<vmem>>, vector<16x128xf32>,
    %c0_114 = arith.constant 0 : index
    %c0_115 = arith.constant 0 : index
    %288 = vector.load %arg11[%c0_114, %c0_115] : memref<16x32xf32, #tpu.memory_space<vmem>>, vector<16x32xf32>
    tpu.vector_store %arg11[%c0_114, %c0_115], %277 {strides = array<i32>} : memref<16x32xf32, #tpu.memory_space<vmem>>, vector<16x32xf32>,
    %c0_116 = arith.constant 0 : index
    %c0_117 = arith.constant 0 : index
    %289 = vector.load %arg9[%c0_116, %c0_117] : memref<16x32xf32, #tpu.memory_space<vmem>>, vector<16x32xf32>
    tpu.vector_store %arg9[%c0_116, %c0_117], %277 {strides = array<i32>} : memref<16x32xf32, #tpu.memory_space<vmem>>, vector<16x32xf32>,
    return
  }
  func.func @transform_0(%arg0: i32) -> (i32, i32) {
    %c0_i32 = arith.constant 0 : i32
    %c0_i32_0 = arith.constant 0 : i32
    %c0_i32_1 = arith.constant 0 : i32
    return %c0_i32, %c0_i32_0 : i32, i32
  }
  func.func @transform_1(%arg0: i32) -> (i32, i32) {
    %c0_i32 = arith.constant 0 : i32
    %c0_i32_0 = arith.constant 0 : i32
    %c0_i32_1 = arith.constant 0 : i32
    return %c0_i32, %c0_i32_0 : i32, i32
  }
  func.func @transform_2(%arg0: i32) -> (i32, i32) {
    %c0_i32 = arith.constant 0 : i32
    %c0_i32_0 = arith.constant 0 : i32
    %c0_i32_1 = arith.constant 0 : i32
    return %c0_i32, %c0_i32_0 : i32, i32
  }
  func.func @transform_3(%arg0: i32) -> (i32, i32) {
    %c0_i32 = arith.constant 0 : i32
    %c0_i32_0 = arith.constant 0 : i32
    %c0_i32_1 = arith.constant 0 : i32
    return %c0_i32, %c0_i32_0 : i32, i32
  }
  func.func @transform_4(%arg0: i32) -> (i32, i32) {
    %c0_i32 = arith.constant 0 : i32
    %c0_i32_0 = arith.constant 0 : i32
    %c0_i32_1 = arith.constant 0 : i32
    return %c0_i32, %c0_i32_0 : i32, i32
  }
  func.func @transform_5(%arg0: i32) -> (i32, i32) {
    %c0_i32 = arith.constant 0 : i32
    %c0_i32_0 = arith.constant 0 : i32
    %c0_i32_1 = arith.constant 0 : i32
    return %c0_i32, %c0_i32_0 : i32, i32
  }
  func.func @transform_6(%arg0: i32) -> (i32, i32) {
    %c0_i32 = arith.constant 0 : i32
    %c0_i32_0 = arith.constant 0 : i32
    %c0_i32_1 = arith.constant 0 : i32
    return %c0_i32, %c0_i32_0 : i32, i32
  }
  func.func @transform_7(%arg0: i32) -> (i32, i32, i32) {
    %c0_i32 = arith.constant 0 : i32
    %c0_i32_0 = arith.constant 0 : i32
    %c0_i32_1 = arith.constant 0 : i32
    return %arg0, %c0_i32, %c0_i32_0 : i32, i32, i32
  }
  func.func @transform_8(%arg0: i32) -> (i32, i32) {
    %c0_i32 = arith.constant 0 : i32
    %c0_i32_0 = arith.constant 0 : i32
    %c0_i32_1 = arith.constant 0 : i32
    return %c0_i32, %c0_i32_0 : i32, i32
  }
}

</mosaic_0001>

<llo_original>
// kernel: tpu_custom_call.1
$region0: #{tpu_custom_call.1}
  #allocation0 [shape = 'u32[]', space=smem, size = 0x4, offset = 0x4, fixed_abs, tag = 'smem constant byte address 0x4 - core index']
  #allocation1 [shape = 'u32[144,128]{1,0:T(1,128)}', space=vmem, size = 0x12000, scoped, tag = 'internal scratch']
  #allocation2 [shape = 'f32[16,128]{1,0:T(8,128)}', space=vmem, size = 0x2000, scoped, tag = 'scratch operand']
  #allocation3 [shape = 'f32[16,32]{1,0:T(8,128)}', space=vmem, size = 0x2000, scoped, tag = 'scratch operand']
  %s0 = inlined_call_operand.hbm [shape: f32[16,128], index: 0, kind: input, shape index: {}]
  %s1 = inlined_call_operand.hbm [shape: f32[16,32], index: 1, kind: input, shape index: {}]
  %s2 = inlined_call_operand.hbm [shape: bf16[128,128], index: 2, kind: input, shape index: {}]
  %s3 = inlined_call_operand.hbm [shape: bf16[32,128], index: 3, kind: input, shape index: {}]
  %s4 = inlined_call_operand.hbm [shape: bf16[32,128], index: 4, kind: input, shape index: {}]
  %s5 = inlined_call_operand.vmem [shape: f32[16,128], index: 5, kind: input, shape index: {}]
  %s6 = inlined_call_operand.hbm [shape: f32[16,128], index: 6, kind: input, shape index: {}]
  %s7 = inlined_call_operand.hbm [shape: f32[8,16,128], index: 7, kind: output, shape index: {0}]
  %s8 = inlined_call_operand.hbm [shape: f32[16,32], index: 8, kind: output, shape index: {1}]
  %9 = xla_tuple %s7, %s8
  %s10 = sld [smem:[#allocation0]]
  $region74: #{tpu_custom_call.1} parent=0
    _
  %s12 = ssub.s32 1, %s10
  %s13 = scalar_select 0, %s12, %s10
  $region1: #{tpu_custom_call.1} parent=0
    #allocation4 [shape = 'u8[8192]{0}', space=vmem, size = 0x2000, scoped, tag = 'input window, operand 0, single buffered']
    #allocation5 [shape = 's32[1]{0}', space=sflag, size = 0x4, scoped, tag = 'scoped memory for tpu_custom_call.1']
    #allocation6 [shape = 's32[1]{0}', space=sflag, size = 0x4, scoped, tag = 'scoped memory for tpu_custom_call.1']
    #allocation7 [shape = 'u8[8192]{0}', space=vmem, size = 0x2000, scoped, tag = 'input window, operand 1, single buffered']
    #allocation8 [shape = 's32[1]{0}', space=sflag, size = 0x4, scoped, tag = 'scoped memory for tpu_custom_call.1']
    #allocation9 [shape = 'u8[32768]{0}', space=vmem, size = 0x8000, scoped, tag = 'input window, operand 2, single buffered']
    #allocation10 [shape = 'u8[8192]{0}', space=vmem, size = 0x2000, scoped, tag = 'input window, operand 3, single buffered']
    #allocation11 [shape = 's32[1]{0}', space=sflag, size = 0x4, scoped, tag = 'scoped memory for tpu_custom_call.1']
    #allocation12 [shape = 'u8[8192]{0}', space=vmem, size = 0x2000, scoped, tag = 'input window, operand 4, single buffered']
    #allocation13 [shape = 'u8[8192]{0}', space=vmem, size = 0x2000, scoped, tag = 'input window, operand 6, single buffered']
    #allocation14 [shape = 's32[1]{0}', space=sflag, size = 0x4, scoped, tag = 'scoped memory for tpu_custom_call.1']
    #allocation15 [shape = 'u8[65536]{0}', space=vmem, size = 0x10000, scoped, tag = 'output window, operand 0, single buffered']
    #allocation16 [shape = 'u8[8192]{0}', space=vmem, size = 0x2000, scoped, tag = 'output window, operand 1, single buffered']
    #allocation17 [shape = 's32[1]{0}', space=sflag, size = 0x4, scoped, tag = 'scoped memory for tpu_custom_call.1']
    %14 = vsyncpa [#allocation5], 0
    %15 = vsyncpa [#allocation8], 0
    %16 = vsyncpa [#allocation11], 0
    %17 = vsyncpa [#allocation14], 0
    %18 = vsyncpa [#allocation6], 0
    %19 = vsyncpa [#allocation17], 0
    // Predicated region
    $region2: #{tpu_custom_call.1} parent=1 // pred_check
      _
    $region3: #{tpu_custom_call.1} parent=1 // pred_check_branch
      %21 = sbr.rel (0) target = $region5
    $region4: #{tpu_custom_call.1} parent=1 // pred_region
      %s23 = ssub.s32 256, 256
      %24 = vsyncadd [#allocation5], %s23
      %s25 = sshll.u32 [#allocation4], 4
      %s26 = int_to_ptr.vmem [resolvable:$true] %s25
      %31 = dma.hbm_to_vmem [thread:$0]  %s0, 256, %s26, [#allocation5], 128, 128, 8
    $region5: #{tpu_custom_call.1} parent=1 // pred_fallthru
      _
    // Predicated region
    $region6: #{tpu_custom_call.1} parent=1 // pred_check
      _
    $region7: #{tpu_custom_call.1} parent=1 // pred_check_branch
      %33 = sbr.rel (0) target = $region9
    $region8: #{tpu_custom_call.1} parent=1 // pred_region
      %s35 = ssub.s32 256, 256
      %36 = vsyncadd [#allocation8], %s35
      %s37 = sshll.u32 [#allocation7], 4
      %s38 = int_to_ptr.vmem [resolvable:$true] %s37
      %43 = dma.hbm_to_vmem [thread:$0]  %s1, 256, %s38, [#allocation8], 128, 128, 8
    $region9: #{tpu_custom_call.1} parent=1 // pred_fallthru
      _
    // Predicated region
    $region10: #{tpu_custom_call.1} parent=1 // pred_check
      _
    $region11: #{tpu_custom_call.1} parent=1 // pred_check_branch
      %45 = sbr.rel (0) target = $region13
    $region12: #{tpu_custom_call.1} parent=1 // pred_region
      %s47 = ssub.s32 1024, 1024
      %48 = vsyncadd [#allocation8], %s47
      %s49 = sshll.u32 [#allocation9], 4
      %s50 = int_to_ptr.vmem [resolvable:$true] %s49
      %55 = dma.hbm_to_vmem [thread:$0]  %s2, 1024, %s50, [#allocation8], 64, 64, 4
    $region13: #{tpu_custom_call.1} parent=1 // pred_fallthru
      _
    // Predicated region
    $region14: #{tpu_custom_call.1} parent=1 // pred_check
      _
    $region15: #{tpu_custom_call.1} parent=1 // pred_check_branch
      %57 = sbr.rel (0) target = $region17
    $region16: #{tpu_custom_call.1} parent=1 // pred_region
      %s59 = ssub.s32 256, 256
      %60 = vsyncadd [#allocation11], %s59
      %s61 = sshll.u32 [#allocation10], 4
      %s62 = int_to_ptr.vmem [resolvable:$true] %s61
      %67 = dma.hbm_to_vmem [thread:$0]  %s3, 256, %s62, [#allocation11], 64, 64, 4
    $region17: #{tpu_custom_call.1} parent=1 // pred_fallthru
      _
    // Predicated region
    $region18: #{tpu_custom_call.1} parent=1 // pred_check
      _
    $region19: #{tpu_custom_call.1} parent=1 // pred_check_branch
      %69 = sbr.rel (0) target = $region21
    $region20: #{tpu_custom_call.1} parent=1 // pred_region
      %s71 = ssub.s32 256, 256
      %72 = vsyncadd [#allocation11], %s71
      %s73 = sshll.u32 [#allocation12], 4
      %s74 = int_to_ptr.vmem [resolvable:$true] %s73
      %79 = dma.hbm_to_vmem [thread:$0]  %s4, 256, %s74, [#allocation11], 64, 64, 4
    $region21: #{tpu_custom_call.1} parent=1 // pred_fallthru
      _
    // Predicated region
    $region22: #{tpu_custom_call.1} parent=1 // pred_check
      _
    $region23: #{tpu_custom_call.1} parent=1 // pred_check_branch
      %81 = sbr.rel (0) target = $region25
    $region24: #{tpu_custom_call.1} parent=1 // pred_region
      _
    $region25: #{tpu_custom_call.1} parent=1 // pred_fallthru
      _
    // Predicated region
    $region26: #{tpu_custom_call.1} parent=1 // pred_check
      _
    $region27: #{tpu_custom_call.1} parent=1 // pred_check_branch
      %83 = sbr.rel (0) target = $region29
    $region28: #{tpu_custom_call.1} parent=1 // pred_region
      %s85 = ssub.s32 256, 256
      %86 = vsyncadd [#allocation14], %s85
      %s87 = sshll.u32 [#allocation13], 4
      %s88 = int_to_ptr.vmem [resolvable:$true] %s87
      %93 = dma.hbm_to_vmem [thread:$0]  %s6, 256, %s88, [#allocation14], 128, 128, 8
    $region29: #{tpu_custom_call.1} parent=1 // pred_fallthru
      _
    // Predicated region
    $region30: #{tpu_custom_call.1} parent=1 // pred_check
      _
    $region31: #{tpu_custom_call.1} parent=1 // pred_check_branch
      %95 = sbr.rel (0) target = $region33
    $region32: #{tpu_custom_call.1} parent=1 // pred_region
      %96 = dma.done [#allocation5], 256
    $region33: #{tpu_custom_call.1} parent=1 // pred_fallthru
      _
    // Predicated region
    $region34: #{tpu_custom_call.1} parent=1 // pred_check
      _
    $region35: #{tpu_custom_call.1} parent=1 // pred_check_branch
      %98 = sbr.rel (0) target = $region37
    $region36: #{tpu_custom_call.1} parent=1 // pred_region
      %99 = dma.done [#allocation8], 256
    $region37: #{tpu_custom_call.1} parent=1 // pred_fallthru
      _
    // Predicated region
    $region38: #{tpu_custom_call.1} parent=1 // pred_check
      _
    $region39: #{tpu_custom_call.1} parent=1 // pred_check_branch
      %101 = sbr.rel (0) target = $region41
    $region40: #{tpu_custom_call.1} parent=1 // pred_region
      %102 = dma.done [#allocation8], 1024
    $region41: #{tpu_custom_call.1} parent=1 // pred_fallthru
      _
    // Predicated region
    $region42: #{tpu_custom_call.1} parent=1 // pred_check
      _
    $region43: #{tpu_custom_call.1} parent=1 // pred_check_branch
      %104 = sbr.rel (0) target = $region45
    $region44: #{tpu_custom_call.1} parent=1 // pred_region
      %105 = dma.done [#allocation11], 256
    $region45: #{tpu_custom_call.1} parent=1 // pred_fallthru
      _
    // Predicated region
    $region46: #{tpu_custom_call.1} parent=1 // pred_check
      _
    $region47: #{tpu_custom_call.1} parent=1 // pred_check_branch
      %107 = sbr.rel (0) target = $region49
    $region48: #{tpu_custom_call.1} parent=1 // pred_region
      %108 = dma.done [#allocation11], 256
    $region49: #{tpu_custom_call.1} parent=1 // pred_fallthru
      _
    // Predicated region
    $region50: #{tpu_custom_call.1} parent=1 // pred_check
      _
    $region51: #{tpu_custom_call.1} parent=1 // pred_check_branch
      %110 = sbr.rel (0) target = $region53
    $region52: #{tpu_custom_call.1} parent=1 // pred_region
      %111 = dma.done [#allocation14], 256
    $region53: #{tpu_custom_call.1} parent=1 // pred_fallthru
      _
    %p113 = scmp.eq.s32.totalorder 0, 0
    // Predicated region
    $region54: #{tpu_custom_call.1} parent=1 // pred_check
      %p114 = pneg %p113
    $region55: #{tpu_custom_call.1} parent=1 // pred_check_branch
      %116 = sbr.rel (%p114) target = $region57
    $region56: #{tpu_custom_call.1} parent=1 // pred_region
      %v117 = vld [vmem:[#allocation4] sm:$0xff]
      %v118 = vld [vmem:[#allocation4 + $0x8] sm:$0xff]
      %119 = vst [vmem:[#allocation2] sm:$0xff] %v117
      %120 = vst [vmem:[#allocation2 + $0x8] sm:$0xff] %v118
      %v121 = vld [vmem:[#allocation7] sm:$0xff]
      %v122 = vld [vmem:[#allocation7 + $0x8] sm:$0xff]
      %vm123 = vcmask 261120
      %124 = vst.msk [vmem:[#allocation3] sm:$0xff] %vm123, %v121
      %125 = vst.msk [vmem:[#allocation3 + $0x8] sm:$0xff] %vm123, %v122
    $region57: #{tpu_custom_call.1} parent=1 // pred_fallthru
      _
    %v126 = vld [vmem:[%s5] sm:$0xff]
    %v127 = vld [vmem:[%s5 + $0x8] sm:$0xff]
    %v128 = vld [vmem:[#allocation13] sm:$0xff]
    %v129 = vld [vmem:[#allocation13 + $0x8] sm:$0xff]
    %v130 = vld [vmem:[#allocation2] sm:$0xff]
    %v131 = vld [vmem:[#allocation2 + $0x8] sm:$0xff]
    %v132 = vld [vmem:[#allocation3] sm:$0xff]
    %v133 = vld [vmem:[#allocation3 + $0x8] sm:$0xff]
    %v134 = vpack.c.bf16 %v133, %v132
    %v135 = vld [vmem:[#allocation10] sm:$0xf]
    %v136 = vld [vmem:[#allocation10 + $0x4] sm:$0xf]
    %v137 = vld [vmem:[#allocation10 + $0x8] sm:$0xf]
    %v138 = vld [vmem:[#allocation10 + $0xc] sm:$0xf]
    %v139 = vpack.c.bf16 %v131, %v130
    %v140 = vld [vmem:[#allocation9] sm:$0xf]
    %v141 = vld [vmem:[#allocation9 + $0x4] sm:$0xf]
    %v142 = vld [vmem:[#allocation9 + $0x8] sm:$0xf]
    %v143 = vld [vmem:[#allocation9 + $0xc] sm:$0xf]
    %v144 = vld [vmem:[#allocation9 + $0x10] sm:$0xf]
    %v145 = vld [vmem:[#allocation9 + $0x14] sm:$0xf]
    %v146 = vld [vmem:[#allocation9 + $0x18] sm:$0xf]
    %v147 = vld [vmem:[#allocation9 + $0x1c] sm:$0xf]
    %v148 = vld [vmem:[#allocation9 + $0x20] sm:$0xf]
    %v149 = vld [vmem:[#allocation9 + $0x24] sm:$0xf]
    %v150 = vld [vmem:[#allocation9 + $0x28] sm:$0xf]
    %v151 = vld [vmem:[#allocation9 + $0x2c] sm:$0xf]
    %v152 = vld [vmem:[#allocation9 + $0x30] sm:$0xf]
    %v153 = vld [vmem:[#allocation9 + $0x34] sm:$0xf]
    %v154 = vld [vmem:[#allocation9 + $0x38] sm:$0xf]
    %v155 = vld [vmem:[#allocation9 + $0x3c] sm:$0xf]
    %v172 = vunpack.c.l.b16 %v140
    %v173 = vunpack.c.l.b16 %v141
    %v174 = vunpack.c.l.b16 %v142
    %v175 = vunpack.c.l.b16 %v143
    %v176 = vunpack.c.l.b16 %v144
    %v177 = vunpack.c.l.b16 %v145
    %v178 = vunpack.c.l.b16 %v146
    %v179 = vunpack.c.l.b16 %v147
    %v180 = vunpack.c.l.b16 %v148
    %v181 = vunpack.c.l.b16 %v149
    %v182 = vunpack.c.l.b16 %v150
    %v183 = vunpack.c.l.b16 %v151
    %v184 = vunpack.c.l.b16 %v152
    %v185 = vunpack.c.l.b16 %v153
    %v186 = vunpack.c.l.b16 %v154
    %v187 = vunpack.c.l.b16 %v155
    %v188 = vpack.c.b16 %v173, %v172
    %v189 = vpack.c.b16 %v175, %v174
    %v190 = vpack.c.b16 %v177, %v176
    %v191 = vpack.c.b16 %v179, %v178
    %v192 = vpack.c.b16 %v181, %v180
    %v193 = vpack.c.b16 %v183, %v182
    %v194 = vpack.c.b16 %v185, %v184
    %v195 = vpack.c.b16 %v187, %v186
    %204 = vmatprep.subr.bf16.mxu0 0
    %205 = vmatpush1.bf16.msra.mxu0 %v188
    %206 = vmatprep.subr.bf16.mxu0 0
    %207 = vmatpush1.bf16.msra.mxu0 %v189
    %208 = vmatprep.subr.bf16.mxu0 0
    %209 = vmatpush1.bf16.msra.mxu0 %v190
    %210 = vmatprep.subr.bf16.mxu0 0
    %211 = vmatpush1.bf16.msra.mxu0 %v191
    %212 = vmatprep.subr.bf16.mxu0 0
    %213 = vmatpush1.bf16.msra.mxu0 %v192
    %214 = vmatprep.subr.bf16.mxu0 0
    %215 = vmatpush1.bf16.msra.mxu0 %v193
    %216 = vmatprep.subr.bf16.mxu0 0
    %217 = vmatpush1.bf16.msra.mxu0 %v194
    %218 = vmatprep.subr.bf16.mxu0 0
    %219 = vmatpush1.bf16.msra.mxu0 %v195
    %220 = vmatprep.subr.bf16.mxu0 0
    %221 = vmatpush1.bf16.msra.mxu0 0
    %222 = vmatprep.subr.bf16.mxu0 0
    %223 = vmatpush1.bf16.msra.mxu0 0
    %224 = vmatprep.subr.bf16.mxu0 0
    %225 = vmatpush1.bf16.msra.mxu0 0
    %226 = vmatprep.subr.bf16.mxu0 0
    %227 = vmatpush1.bf16.msra.mxu0 0
    %228 = vmatprep.subr.bf16.mxu0 0
    %229 = vmatpush1.bf16.msra.mxu0 0
    %230 = vmatprep.subr.bf16.mxu0 0
    %231 = vmatpush1.bf16.msra.mxu0 0
    %232 = vmatprep.subr.bf16.mxu0 0
    %233 = vmatpush1.bf16.msra.mxu0 0
    %234 = vmatprep.subr.bf16.mxu0 0
    %235 = vmatpush1.bf16.msra.mxu0 0
    %236 = vmatprep.mubr.bf16.mxu0 0
    %237 = vmatmul.mubr.bf16.gmra.mrb[0].mxu0 %v139
    %v238 = vpop.f32.mrb[0].mxu0
    %v239 = vadd.f32 0.0, %v238
    %v240 = vpop.f32.mrb[0].mxu0
    %v241 = vpop.f32.mrb[0].mxu0
    %v242 = vadd.f32 0.0, %v241
    %v243 = vpop.f32.mrb[0].mxu0
    %244 = vdwg.mxu0
    %v249 = vunpack.c.l.b16 %v135
    %v250 = vunpack.c.l.b16 %v136
    %v251 = vunpack.c.l.b16 %v137
    %v252 = vunpack.c.l.b16 %v138
    %v253 = vpack.c.b16 %v250, %v249
    %v254 = vpack.c.b16 %v252, %v251
    %vm257 = vcmask 261120
    %v259 = vsel %vm257, %v134, 0
    %261 = vmatprep.subr.bf16.mxu0 0
    %262 = vmatpush1.bf16.msra.mxu0 %v253
    %263 = vmatprep.subr.bf16.mxu0 0
    %264 = vmatpush1.bf16.msra.mxu0 %v254
    %265 = vmatprep.subr.bf16.mxu0 0
    %266 = vmatpush1.bf16.msra.mxu0 0
    %267 = vmatprep.subr.bf16.mxu0 0
    %268 = vmatpush1.bf16.msra.mxu0 0
    %269 = vmatprep.subr.bf16.mxu0 0
    %270 = vmatpush1.bf16.msra.mxu0 0
    %271 = vmatprep.subr.bf16.mxu0 0
    %272 = vmatpush1.bf16.msra.mxu0 0
    %273 = vmatprep.subr.bf16.mxu0 0
    %274 = vmatpush1.bf16.msra.mxu0 0
    %275 = vmatprep.subr.bf16.mxu0 0
    %276 = vmatpush1.bf16.msra.mxu0 0
    %277 = vmatprep.subr.bf16.mxu0 0
    %278 = vmatpush1.bf16.msra.mxu0 0
    %279 = vmatprep.subr.bf16.mxu0 0
    %280 = vmatpush1.bf16.msra.mxu0 0
    %281 = vmatprep.subr.bf16.mxu0 0
    %282 = vmatpush1.bf16.msra.mxu0 0
    %283 = vmatprep.subr.bf16.mxu0 0
    %284 = vmatpush1.bf16.msra.mxu0 0
    %285 = vmatprep.subr.bf16.mxu0 0
    %286 = vmatpush1.bf16.msra.mxu0 0
    %287 = vmatprep.subr.bf16.mxu0 0
    %288 = vmatpush1.bf16.msra.mxu0 0
    %289 = vmatprep.subr.bf16.mxu0 0
    %290 = vmatpush1.bf16.msra.mxu0 0
    %291 = vmatprep.subr.bf16.mxu0 0
    %292 = vmatpush1.bf16.msra.mxu0 0
    %293 = vmatprep.mubr.bf16.mxu0 0
    %294 = vmatmul.mubr.bf16.gmra.mrb[0].mxu0 %v259
    %v295 = vpop.f32.mrb[0].mxu0
    %v296 = vadd.f32 %v239, %v295
    %v297 = vpop.f32.mrb[0].mxu0
    %v298 = vpop.f32.mrb[0].mxu0
    %v299 = vadd.f32 %v242, %v298
    %v300 = vpop.f32.mrb[0].mxu0
    %301 = vdwg.mxu0
    %v302 = vadd.f32 %v296, %v126
    %v303 = vadd.f32 %v299, %v127
    %v304 = vxor.u32 %v302, 2147483648
    %v305 = vxor.u32 %v303, 2147483648
    %v306 = vmul.f32 %v304, 1.442695
    %v307 = vpow.pop %v306
    %v308 = vmul.f32 %v305, 1.442695
    %v309 = vpow.pop %v308
    %v310 = vadd.f32 %v307, 1.0
    %v311 = vadd.f32 %v309, 1.0
    %v312 = vrcp.pop %v310
    %v313 = vmul.f32 1.0, %v312
    %v314 = vrcp.pop %v311
    %v315 = vmul.f32 1.0, %v314
    %318 = vrot.lane.b32.xlu0 %v302, 32
    %v319 = vpop.permute.xlu0 %318
    %320 = vrot.lane.b32.xlu0 %v303, 32
    %v321 = vpop.permute.xlu0 %320
    %v324 = vmul.f32 %v313, %v319
    %v325 = vmul.f32 %v315, %v321
    %328 = vrot.lane.b32.xlu0 %v324, 64
    %v329 = vpop.permute.xlu0 %328
    %330 = vrot.lane.b32.xlu0 %v325, 64
    %v331 = vpop.permute.xlu0 %330
    %v334 = vadd.f32 %v302, %v329
    %v335 = vadd.f32 %v303, %v331
    %v336 = vtanh.pop %v334
    %v337 = vtanh.pop %v335
    %v338 = vsub.f32 1.0, %v313
    %v339 = vsub.f32 1.0, %v315
    %342 = vrot.lane.b32.xlu0 %v336, 96
    %v343 = vpop.permute.xlu0 %342
    %344 = vrot.lane.b32.xlu0 %v337, 96
    %v345 = vpop.permute.xlu0 %344
    %v348 = vmul.f32 %v338, %v343
    %v349 = vmul.f32 %v339, %v345
    %352 = vrot.lane.b32.xlu0 %v132, 32
    %v353 = vpop.permute.xlu0 %352
    %354 = vrot.lane.b32.xlu0 %v133, 32
    %v355 = vpop.permute.xlu0 %354
    %v358 = vmul.f32 %v313, %v353
    %v359 = vmul.f32 %v315, %v355
    %v360 = vadd.f32 %v348, %v358
    %v361 = vadd.f32 %v349, %v359
    %v362 = vpack.c.bf16 %v361, %v360
    %v363 = vld [vmem:[#allocation12] sm:$0xf]
    %v364 = vld [vmem:[#allocation12 + $0x4] sm:$0xf]
    %v365 = vld [vmem:[#allocation12 + $0x8] sm:$0xf]
    %v366 = vld [vmem:[#allocation12 + $0xc] sm:$0xf]
    %368 = vrot.lane.b32.xlu0 %v362, 96
    %v369 = vpop.permute.xlu0 %368
    %v374 = vunpack.c.l.b16 %v363
    %v375 = vunpack.c.l.b16 %v364
    %v376 = vunpack.c.l.b16 %v365
    %v377 = vunpack.c.l.b16 %v366
    %v378 = vpack.c.b16 %v375, %v374
    %v379 = vpack.c.b16 %v377, %v376
    %v383 = vsel %vm257, %v369, 0
    %385 = vmatprep.subr.bf16.mxu0 0
    %386 = vmatpush1.bf16.msra.mxu0 %v378
    %387 = vmatprep.subr.bf16.mxu0 0
    %388 = vmatpush1.bf16.msra.mxu0 %v379
    %389 = vmatprep.subr.bf16.mxu0 0
    %390 = vmatpush1.bf16.msra.mxu0 0
    %391 = vmatprep.subr.bf16.mxu0 0
    %392 = vmatpush1.bf16.msra.mxu0 0
    %393 = vmatprep.subr.bf16.mxu0 0
    %394 = vmatpush1.bf16.msra.mxu0 0
    %395 = vmatprep.subr.bf16.mxu0 0
    %396 = vmatpush1.bf16.msra.mxu0 0
    %397 = vmatprep.subr.bf16.mxu0 0
    %398 = vmatpush1.bf16.msra.mxu0 0
    %399 = vmatprep.subr.bf16.mxu0 0
    %400 = vmatpush1.bf16.msra.mxu0 0
    %401 = vmatprep.subr.bf16.mxu0 0
    %402 = vmatpush1.bf16.msra.mxu0 0
    %403 = vmatprep.subr.bf16.mxu0 0
    %404 = vmatpush1.bf16.msra.mxu0 0
    %405 = vmatprep.subr.bf16.mxu0 0
    %406 = vmatpush1.bf16.msra.mxu0 0
    %407 = vmatprep.subr.bf16.mxu0 0
    %408 = vmatpush1.bf16.msra.mxu0 0
    %409 = vmatprep.subr.bf16.mxu0 0
    %410 = vmatpush1.bf16.msra.mxu0 0
    %411 = vmatprep.subr.bf16.mxu0 0
    %412 = vmatpush1.bf16.msra.mxu0 0
    %413 = vmatprep.subr.bf16.mxu0 0
    %414 = vmatpush1.bf16.msra.mxu0 0
    %415 = vmatprep.subr.bf16.mxu0 0
    %416 = vmatpush1.bf16.msra.mxu0 0
    %417 = vmatprep.mubr.bf16.mxu0 0
    %418 = vmatmul.mubr.bf16.gmra.mrb[0].mxu0 %v383
    %v419 = vpop.f32.mrb[0].mxu0
    %v420 = vadd.f32 %v128, %v419
    %v421 = vpop.f32.mrb[0].mxu0
    %v422 = vpop.f32.mrb[0].mxu0
    %v423 = vadd.f32 %v129, %v422
    %v424 = vpop.f32.mrb[0].mxu0
    %425 = vdwg.mxu0
    %426 = vst [vmem:[#allocation15] sm:$0xff] %v420
    %427 = vst [vmem:[#allocation15 + $0x8] sm:$0xff] %v423
    %v428 = vtanh.pop %v420
    %v429 = vtanh.pop %v423
    %v430 = vld [vmem:[#allocation10] sm:$0xf]
    %v431 = vld [vmem:[#allocation10 + $0x4] sm:$0xf]
    %v432 = vld [vmem:[#allocation10 + $0x8] sm:$0xf]
    %v433 = vld [vmem:[#allocation10 + $0xc] sm:$0xf]
    %v434 = vpack.c.bf16 %v429, %v428
    %v435 = vld [vmem:[#allocation9] sm:$0xf]
    %v436 = vld [vmem:[#allocation9 + $0x4] sm:$0xf]
    %v437 = vld [vmem:[#allocation9 + $0x8] sm:$0xf]
    %v438 = vld [vmem:[#allocation9 + $0xc] sm:$0xf]
    %v439 = vld [vmem:[#allocation9 + $0x10] sm:$0xf]
    %v440 = vld [vmem:[#allocation9 + $0x14] sm:$0xf]
    %v441 = vld [vmem:[#allocation9 + $0x18] sm:$0xf]
    %v442 = vld [vmem:[#allocation9 + $0x1c] sm:$0xf]
    %v443 = vld [vmem:[#allocation9 + $0x20] sm:$0xf]
    %v444 = vld [vmem:[#allocation9 + $0x24] sm:$0xf]
    %v445 = vld [vmem:[#allocation9 + $0x28] sm:$0xf]
    %v446 = vld [vmem:[#allocation9 + $0x2c] sm:$0xf]
    %v447 = vld [vmem:[#allocation9 + $0x30] sm:$0xf]
    %v448 = vld [vmem:[#allocation9 + $0x34] sm:$0xf]
    %v449 = vld [vmem:[#allocation9 + $0x38] sm:$0xf]
    %v450 = vld [vmem:[#allocation9 + $0x3c] sm:$0xf]
    %v467 = vunpack.c.l.b16 %v435
    %v468 = vunpack.c.l.b16 %v436
    %v469 = vunpack.c.l.b16 %v437
    %v470 = vunpack.c.l.b16 %v438
    %v471 = vunpack.c.l.b16 %v439
    %v472 = vunpack.c.l.b16 %v440
    %v473 = vunpack.c.l.b16 %v441
    %v474 = vunpack.c.l.b16 %v442
    %v475 = vunpack.c.l.b16 %v443
    %v476 = vunpack.c.l.b16 %v444
    %v477 = vunpack.c.l.b16 %v445
    %v478 = vunpack.c.l.b16 %v446
    %v479 = vunpack.c.l.b16 %v447
    %v480 = vunpack.c.l.b16 %v448
    %v481 = vunpack.c.l.b16 %v449
    %v482 = vunpack.c.l.b16 %v450
    %v483 = vpack.c.b16 %v468, %v467
    %v484 = vpack.c.b16 %v470, %v469
    %v485 = vpack.c.b16 %v472, %v471
    %v486 = vpack.c.b16 %v474, %v473
    %v487 = vpack.c.b16 %v476, %v475
    %v488 = vpack.c.b16 %v478, %v477
    %v489 = vpack.c.b16 %v480, %v479
    %v490 = vpack.c.b16 %v482, %v481
    %499 = vmatprep.subr.bf16.mxu0 0
    %500 = vmatpush1.bf16.msra.mxu0 %v483
    %501 = vmatprep.subr.bf16.mxu0 0
    %502 = vmatpush1.bf16.msra.mxu0 %v484
    %503 = vmatprep.subr.bf16.mxu0 0
    %504 = vmatpush1.bf16.msra.mxu0 %v485
    %505 = vmatprep.subr.bf16.mxu0 0
    %506 = vmatpush1.bf16.msra.mxu0 %v486
    %507 = vmatprep.subr.bf16.mxu0 0
    %508 = vmatpush1.bf16.msra.mxu0 %v487
    %509 = vmatprep.subr.bf16.mxu0 0
    %510 = vmatpush1.bf16.msra.mxu0 %v488
    %511 = vmatprep.subr.bf16.mxu0 0
    %512 = vmatpush1.bf16.msra.mxu0 %v489
    %513 = vmatprep.subr.bf16.mxu0 0
    %514 = vmatpush1.bf16.msra.mxu0 %v490
    %515 = vmatprep.subr.bf16.mxu0 0
    %516 = vmatpush1.bf16.msra.mxu0 0
    %517 = vmatprep.subr.bf16.mxu0 0
    %518 = vmatpush1.bf16.msra.mxu0 0
    %519 = vmatprep.subr.bf16.mxu0 0
    %520 = vmatpush1.bf16.msra.mxu0 0
    %521 = vmatprep.subr.bf16.mxu0 0
    %522 = vmatpush1.bf16.msra.mxu0 0
    %523 = vmatprep.subr.bf16.mxu0 0
    %524 = vmatpush1.bf16.msra.mxu0 0
    %525 = vmatprep.subr.bf16.mxu0 0
    %526 = vmatpush1.bf16.msra.mxu0 0
    %527 = vmatprep.subr.bf16.mxu0 0
    %528 = vmatpush1.bf16.msra.mxu0 0
    %529 = vmatprep.subr.bf16.mxu0 0
    %530 = vmatpush1.bf16.msra.mxu0 0
    %531 = vmatprep.mubr.bf16.mxu0 0
    %532 = vmatmul.mubr.bf16.gmra.mrb[0].mxu0 %v434
    %v533 = vpop.f32.mrb[0].mxu0
    %v534 = vadd.f32 0.0, %v533
    %v535 = vpop.f32.mrb[0].mxu0
    %v536 = vpop.f32.mrb[0].mxu0
    %v537 = vadd.f32 0.0, %v536
    %v538 = vpop.f32.mrb[0].mxu0
    %539 = vdwg.mxu0
    %v544 = vunpack.c.l.b16 %v430
    %v545 = vunpack.c.l.b16 %v431
    %v546 = vunpack.c.l.b16 %v432
    %v547 = vunpack.c.l.b16 %v433
    %v548 = vpack.c.b16 %v545, %v544
    %v549 = vpack.c.b16 %v547, %v546
    %552 = vmatprep.subr.bf16.mxu0 0
    %553 = vmatpush1.bf16.msra.mxu0 %v548
    %554 = vmatprep.subr.bf16.mxu0 0
    %555 = vmatpush1.bf16.msra.mxu0 %v549
    %556 = vmatprep.subr.bf16.mxu0 0
    %557 = vmatpush1.bf16.msra.mxu0 0
    %558 = vmatprep.subr.bf16.mxu0 0
    %559 = vmatpush1.bf16.msra.mxu0 0
    %560 = vmatprep.subr.bf16.mxu0 0
    %561 = vmatpush1.bf16.msra.mxu0 0
    %562 = vmatprep.subr.bf16.mxu0 0
    %563 = vmatpush1.bf16.msra.mxu0 0
    %564 = vmatprep.subr.bf16.mxu0 0
    %565 = vmatpush1.bf16.msra.mxu0 0
    %566 = vmatprep.subr.bf16.mxu0 0
    %567 = vmatpush1.bf16.msra.mxu0 0
    %568 = vmatprep.subr.bf16.mxu0 0
    %569 = vmatpush1.bf16.msra.mxu0 0
    %570 = vmatprep.subr.bf16.mxu0 0
    %571 = vmatpush1.bf16.msra.mxu0 0
    %572 = vmatprep.subr.bf16.mxu0 0
    %573 = vmatpush1.bf16.msra.mxu0 0
    %574 = vmatprep.subr.bf16.mxu0 0
    %575 = vmatpush1.bf16.msra.mxu0 0
    %576 = vmatprep.subr.bf16.mxu0 0
    %577 = vmatpush1.bf16.msra.mxu0 0
    %578 = vmatprep.subr.bf16.mxu0 0
    %579 = vmatpush1.bf16.msra.mxu0 0
    %580 = vmatprep.subr.bf16.mxu0 0
    %581 = vmatpush1.bf16.msra.mxu0 0
    %582 = vmatprep.subr.bf16.mxu0 0
    %583 = vmatpush1.bf16.msra.mxu0 0
    %584 = vmatprep.mubr.bf16.mxu0 0
    %585 = vmatmul.mubr.bf16.gmra.mrb[0].mxu0 %v383
    %v586 = vpop.f32.mrb[0].mxu0
    %v587 = vadd.f32 %v534, %v586
    %v588 = vpop.f32.mrb[0].mxu0
    %v589 = vpop.f32.mrb[0].mxu0
    %v590 = vadd.f32 %v537, %v589
    %v591 = vpop.f32.mrb[0].mxu0
    %592 = vdwg.mxu0
    %v593 = vadd.f32 %v587, %v126
    %v594 = vadd.f32 %v590, %v127
    %v595 = vxor.u32 %v593, 2147483648
    %v596 = vxor.u32 %v594, 2147483648
    %v597 = vmul.f32 %v595, 1.442695
    %v598 = vpow.pop %v597
    %v599 = vmul.f32 %v596, 1.442695
    %v600 = vpow.pop %v599
    %v601 = vadd.f32 %v598, 1.0
    %v602 = vadd.f32 %v600, 1.0
    %v603 = vrcp.pop %v601
    %v604 = vmul.f32 1.0, %v603
    %v605 = vrcp.pop %v602
    %v606 = vmul.f32 1.0, %v605
    %609 = vrot.lane.b32.xlu0 %v593, 32
    %v610 = vpop.permute.xlu0 %609
    %611 = vrot.lane.b32.xlu0 %v594, 32
    %v612 = vpop.permute.xlu0 %611
    %v615 = vmul.f32 %v604, %v610
    %v616 = vmul.f32 %v606, %v612
    %619 = vrot.lane.b32.xlu0 %v615, 64
    %v620 = vpop.permute.xlu0 %619
    %621 = vrot.lane.b32.xlu0 %v616, 64
    %v622 = vpop.permute.xlu0 %621
    %v625 = vadd.f32 %v593, %v620
    %v626 = vadd.f32 %v594, %v622
    %v627 = vtanh.pop %v625
    %v628 = vtanh.pop %v626
    %v629 = vsub.f32 1.0, %v604
    %v630 = vsub.f32 1.0, %v606
    %633 = vrot.lane.b32.xlu0 %v627, 96
    %v634 = vpop.permute.xlu0 %633
    %635 = vrot.lane.b32.xlu0 %v628, 96
    %v636 = vpop.permute.xlu0 %635
    %v639 = vmul.f32 %v629, %v634
    %v640 = vmul.f32 %v630, %v636
    %v641 = vmul.f32 %v604, %v360
    %v642 = vmul.f32 %v606, %v361
    %v643 = vadd.f32 %v639, %v641
    %v644 = vadd.f32 %v640, %v642
    %v645 = vpack.c.bf16 %v644, %v643
    %v646 = vld [vmem:[#allocation12] sm:$0xf]
    %v647 = vld [vmem:[#allocation12 + $0x4] sm:$0xf]
    %v648 = vld [vmem:[#allocation12 + $0x8] sm:$0xf]
    %v649 = vld [vmem:[#allocation12 + $0xc] sm:$0xf]
    %651 = vrot.lane.b32.xlu0 %v645, 96
    %v652 = vpop.permute.xlu0 %651
    %v657 = vunpack.c.l.b16 %v646
    %v658 = vunpack.c.l.b16 %v647
    %v659 = vunpack.c.l.b16 %v648
    %v660 = vunpack.c.l.b16 %v649
    %v661 = vpack.c.b16 %v658, %v657
    %v662 = vpack.c.b16 %v660, %v659
    %v666 = vsel %vm257, %v652, 0
    %668 = vmatprep.subr.bf16.mxu0 0
    %669 = vmatpush1.bf16.msra.mxu0 %v661
    %670 = vmatprep.subr.bf16.mxu0 0
    %671 = vmatpush1.bf16.msra.mxu0 %v662
    %672 = vmatprep.subr.bf16.mxu0 0
    %673 = vmatpush1.bf16.msra.mxu0 0
    %674 = vmatprep.subr.bf16.mxu0 0
    %675 = vmatpush1.bf16.msra.mxu0 0
    %676 = vmatprep.subr.bf16.mxu0 0
    %677 = vmatpush1.bf16.msra.mxu0 0
    %678 = vmatprep.subr.bf16.mxu0 0
    %679 = vmatpush1.bf16.msra.mxu0 0
    %680 = vmatprep.subr.bf16.mxu0 0
    %681 = vmatpush1.bf16.msra.mxu0 0
    %682 = vmatprep.subr.bf16.mxu0 0
    %683 = vmatpush1.bf16.msra.mxu0 0
    %684 = vmatprep.subr.bf16.mxu0 0
    %685 = vmatpush1.bf16.msra.mxu0 0
    %686 = vmatprep.subr.bf16.mxu0 0
    %687 = vmatpush1.bf16.msra.mxu0 0
    %688 = vmatprep.subr.bf16.mxu0 0
    %689 = vmatpush1.bf16.msra.mxu0 0
    %690 = vmatprep.subr.bf16.mxu0 0
    %691 = vmatpush1.bf16.msra.mxu0 0
    %692 = vmatprep.subr.bf16.mxu0 0
    %693 = vmatpush1.bf16.msra.mxu0 0
    %694 = vmatprep.subr.bf16.mxu0 0
    %695 = vmatpush1.bf16.msra.mxu0 0
    %696 = vmatprep.subr.bf16.mxu0 0
    %697 = vmatpush1.bf16.msra.mxu0 0
    %698 = vmatprep.subr.bf16.mxu0 0
    %699 = vmatpush1.bf16.msra.mxu0 0
    %700 = vmatprep.mubr.bf16.mxu0 0
    %701 = vmatmul.mubr.bf16.gmra.mrb[0].mxu0 %v666
    %v702 = vpop.f32.mrb[0].mxu0
    %v703 = vadd.f32 %v128, %v702
    %v704 = vpop.f32.mrb[0].mxu0
    %v705 = vpop.f32.mrb[0].mxu0
    %v706 = vadd.f32 %v129, %v705
    %v707 = vpop.f32.mrb[0].mxu0
    %708 = vdwg.mxu0
    %s709 = scalar_lea.vmem [#allocation15], 16
    %710 = vst [vmem:[%s709] sm:$0xff] %v703
    %711 = vst [vmem:[%s709 + $0x8] sm:$0xff] %v706
    %v712 = vtanh.pop %v703
    %v713 = vtanh.pop %v706
    %v714 = vld [vmem:[#allocation10] sm:$0xf]
    %v715 = vld [vmem:[#allocation10 + $0x4] sm:$0xf]
    %v716 = vld [vmem:[#allocation10 + $0x8] sm:$0xf]
    %v717 = vld [vmem:[#allocation10 + $0xc] sm:$0xf]
    %v718 = vpack.c.bf16 %v713, %v712
    %v719 = vld [vmem:[#allocation9] sm:$0xf]
    %v720 = vld [vmem:[#allocation9 + $0x4] sm:$0xf]
    %v721 = vld [vmem:[#allocation9 + $0x8] sm:$0xf]
    %v722 = vld [vmem:[#allocation9 + $0xc] sm:$0xf]
    %v723 = vld [vmem:[#allocation9 + $0x10] sm:$0xf]
    %v724 = vld [vmem:[#allocation9 + $0x14] sm:$0xf]
    %v725 = vld [vmem:[#allocation9 + $0x18] sm:$0xf]
    %v726 = vld [vmem:[#allocation9 + $0x1c] sm:$0xf]
    %v727 = vld [vmem:[#allocation9 + $0x20] sm:$0xf]
    %v728 = vld [vmem:[#allocation9 + $0x24] sm:$0xf]
    %v729 = vld [vmem:[#allocation9 + $0x28] sm:$0xf]
    %v730 = vld [vmem:[#allocation9 + $0x2c] sm:$0xf]
    %v731 = vld [vmem:[#allocation9 + $0x30] sm:$0xf]
    %v732 = vld [vmem:[#allocation9 + $0x34] sm:$0xf]
    %v733 = vld [vmem:[#allocation9 + $0x38] sm:$0xf]
    %v734 = vld [vmem:[#allocation9 + $0x3c] sm:$0xf]
    %v751 = vunpack.c.l.b16 %v719
    %v752 = vunpack.c.l.b16 %v720
    %v753 = vunpack.c.l.b16 %v721
    %v754 = vunpack.c.l.b16 %v722
    %v755 = vunpack.c.l.b16 %v723
    %v756 = vunpack.c.l.b16 %v724
    %v757 = vunpack.c.l.b16 %v725
    %v758 = vunpack.c.l.b16 %v726
    %v759 = vunpack.c.l.b16 %v727
    %v760 = vunpack.c.l.b16 %v728
    %v761 = vunpack.c.l.b16 %v729
    %v762 = vunpack.c.l.b16 %v730
    %v763 = vunpack.c.l.b16 %v731
    %v764 = vunpack.c.l.b16 %v732
    %v765 = vunpack.c.l.b16 %v733
    %v766 = vunpack.c.l.b16 %v734
    %v767 = vpack.c.b16 %v752, %v751
    %v768 = vpack.c.b16 %v754, %v753
    %v769 = vpack.c.b16 %v756, %v755
    %v770 = vpack.c.b16 %v758, %v757
    %v771 = vpack.c.b16 %v760, %v759
    %v772 = vpack.c.b16 %v762, %v761
    %v773 = vpack.c.b16 %v764, %v763
    %v774 = vpack.c.b16 %v766, %v765
    %783 = vmatprep.subr.bf16.mxu0 0
    %784 = vmatpush1.bf16.msra.mxu0 %v767
    %785 = vmatprep.subr.bf16.mxu0 0
    %786 = vmatpush1.bf16.msra.mxu0 %v768
    %787 = vmatprep.subr.bf16.mxu0 0
    %788 = vmatpush1.bf16.msra.mxu0 %v769
    %789 = vmatprep.subr.bf16.mxu0 0
    %790 = vmatpush1.bf16.msra.mxu0 %v770
    %791 = vmatprep.subr.bf16.mxu0 0
    %792 = vmatpush1.bf16.msra.mxu0 %v771
    %793 = vmatprep.subr.bf16.mxu0 0
    %794 = vmatpush1.bf16.msra.mxu0 %v772
    %795 = vmatprep.subr.bf16.mxu0 0
    %796 = vmatpush1.bf16.msra.mxu0 %v773
    %797 = vmatprep.subr.bf16.mxu0 0
    %798 = vmatpush1.bf16.msra.mxu0 %v774
    %799 = vmatprep.subr.bf16.mxu0 0
    %800 = vmatpush1.bf16.msra.mxu0 0
    %801 = vmatprep.subr.bf16.mxu0 0
    %802 = vmatpush1.bf16.msra.mxu0 0
    %803 = vmatprep.subr.bf16.mxu0 0
    %804 = vmatpush1.bf16.msra.mxu0 0
    %805 = vmatprep.subr.bf16.mxu0 0
    %806 = vmatpush1.bf16.msra.mxu0 0
    %807 = vmatprep.subr.bf16.mxu0 0
    %808 = vmatpush1.bf16.msra.mxu0 0
    %809 = vmatprep.subr.bf16.mxu0 0
    %810 = vmatpush1.bf16.msra.mxu0 0
    %811 = vmatprep.subr.bf16.mxu0 0
    %812 = vmatpush1.bf16.msra.mxu0 0
    %813 = vmatprep.subr.bf16.mxu0 0
    %814 = vmatpush1.bf16.msra.mxu0 0
    %815 = vmatprep.mubr.bf16.mxu0 0
    %816 = vmatmul.mubr.bf16.gmra.mrb[0].mxu0 %v718
    %v817 = vpop.f32.mrb[0].mxu0
    %v818 = vadd.f32 0.0, %v817
    %v819 = vpop.f32.mrb[0].mxu0
    %v820 = vpop.f32.mrb[0].mxu0
    %v821 = vadd.f32 0.0, %v820
    %v822 = vpop.f32.mrb[0].mxu0
    %823 = vdwg.mxu0
    %v828 = vunpack.c.l.b16 %v714
    %v829 = vunpack.c.l.b16 %v715
    %v830 = vunpack.c.l.b16 %v716
    %v831 = vunpack.c.l.b16 %v717
    %v832 = vpack.c.b16 %v829, %v828
    %v833 = vpack.c.b16 %v831, %v830
    %836 = vmatprep.subr.bf16.mxu0 0
    %837 = vmatpush1.bf16.msra.mxu0 %v832
    %838 = vmatprep.subr.bf16.mxu0 0
    %839 = vmatpush1.bf16.msra.mxu0 %v833
    %840 = vmatprep.subr.bf16.mxu0 0
    %841 = vmatpush1.bf16.msra.mxu0 0
    %842 = vmatprep.subr.bf16.mxu0 0
    %843 = vmatpush1.bf16.msra.mxu0 0
    %844 = vmatprep.subr.bf16.mxu0 0
    %845 = vmatpush1.bf16.msra.mxu0 0
    %846 = vmatprep.subr.bf16.mxu0 0
    %847 = vmatpush1.bf16.msra.mxu0 0
    %848 = vmatprep.subr.bf16.mxu0 0
    %849 = vmatpush1.bf16.msra.mxu0 0
    %850 = vmatprep.subr.bf16.mxu0 0
    %851 = vmatpush1.bf16.msra.mxu0 0
    %852 = vmatprep.subr.bf16.mxu0 0
    %853 = vmatpush1.bf16.msra.mxu0 0
    %854 = vmatprep.subr.bf16.mxu0 0
    %855 = vmatpush1.bf16.msra.mxu0 0
    %856 = vmatprep.subr.bf16.mxu0 0
    %857 = vmatpush1.bf16.msra.mxu0 0
    %858 = vmatprep.subr.bf16.mxu0 0
    %859 = vmatpush1.bf16.msra.mxu0 0
    %860 = vmatprep.subr.bf16.mxu0 0
    %861 = vmatpush1.bf16.msra.mxu0 0
    %862 = vmatprep.subr.bf16.mxu0 0
    %863 = vmatpush1.bf16.msra.mxu0 0
    %864 = vmatprep.subr.bf16.mxu0 0
    %865 = vmatpush1.bf16.msra.mxu0 0
    %866 = vmatprep.subr.bf16.mxu0 0
    %867 = vmatpush1.bf16.msra.mxu0 0
    %868 = vmatprep.mubr.bf16.mxu0 0
    %869 = vmatmul.mubr.bf16.gmra.mrb[0].mxu0 %v666
    %v870 = vpop.f32.mrb[0].mxu0
    %v871 = vadd.f32 %v818, %v870
    %v872 = vpop.f32.mrb[0].mxu0
    %v873 = vpop.f32.mrb[0].mxu0
    %v874 = vadd.f32 %v821, %v873
    %v875 = vpop.f32.mrb[0].mxu0
    %876 = vdwg.mxu0
    %v877 = vadd.f32 %v871, %v126
    %v878 = vadd.f32 %v874, %v127
    %v879 = vxor.u32 %v877, 2147483648
    %v880 = vxor.u32 %v878, 2147483648
    %v881 = vmul.f32 %v879, 1.442695
    %v882 = vpow.pop %v881
    %v883 = vmul.f32 %v880, 1.442695
    %v884 = vpow.pop %v883
    %v885 = vadd.f32 %v882, 1.0
    %v886 = vadd.f32 %v884, 1.0
    %v887 = vrcp.pop %v885
    %v888 = vmul.f32 1.0, %v887
    %v889 = vrcp.pop %v886
    %v890 = vmul.f32 1.0, %v889
    %893 = vrot.lane.b32.xlu0 %v877, 32
    %v894 = vpop.permute.xlu0 %893
    %895 = vrot.lane.b32.xlu0 %v878, 32
    %v896 = vpop.permute.xlu0 %895
    %v899 = vmul.f32 %v888, %v894
    %v900 = vmul.f32 %v890, %v896
    %903 = vrot.lane.b32.xlu0 %v899, 64
    %v904 = vpop.permute.xlu0 %903
    %905 = vrot.lane.b32.xlu0 %v900, 64
    %v906 = vpop.permute.xlu0 %905
    %v909 = vadd.f32 %v877, %v904
    %v910 = vadd.f32 %v878, %v906
    %v911 = vtanh.pop %v909
    %v912 = vtanh.pop %v910
    %v913 = vsub.f32 1.0, %v888
    %v914 = vsub.f32 1.0, %v890
    %917 = vrot.lane.b32.xlu0 %v911, 96
    %v918 = vpop.permute.xlu0 %917
    %919 = vrot.lane.b32.xlu0 %v912, 96
    %v920 = vpop.permute.xlu0 %919
    %v923 = vmul.f32 %v913, %v918
    %v924 = vmul.f32 %v914, %v920
    %v925 = vmul.f32 %v888, %v643
    %v926 = vmul.f32 %v890, %v644
    %v927 = vadd.f32 %v923, %v925
    %v928 = vadd.f32 %v924, %v926
    %v929 = vpack.c.bf16 %v928, %v927
    %v930 = vld [vmem:[#allocation12] sm:$0xf]
    %v931 = vld [vmem:[#allocation12 + $0x4] sm:$0xf]
    %v932 = vld [vmem:[#allocation12 + $0x8] sm:$0xf]
    %v933 = vld [vmem:[#allocation12 + $0xc] sm:$0xf]
    %935 = vrot.lane.b32.xlu0 %v929, 96
    %v936 = vpop.permute.xlu0 %935
    %v941 = vunpack.c.l.b16 %v930
    %v942 = vunpack.c.l.b16 %v931
    %v943 = vunpack.c.l.b16 %v932
    %v944 = vunpack.c.l.b16 %v933
    %v945 = vpack.c.b16 %v942, %v941
    %v946 = vpack.c.b16 %v944, %v943
    %v950 = vsel %vm257, %v936, 0
    %952 = vmatprep.subr.bf16.mxu0 0
    %953 = vmatpush1.bf16.msra.mxu0 %v945
    %954 = vmatprep.subr.bf16.mxu0 0
    %955 = vmatpush1.bf16.msra.mxu0 %v946
    %956 = vmatprep.subr.bf16.mxu0 0
    %957 = vmatpush1.bf16.msra.mxu0 0
    %958 = vmatprep.subr.bf16.mxu0 0
    %959 = vmatpush1.bf16.msra.mxu0 0
    %960 = vmatprep.subr.bf16.mxu0 0
    %961 = vmatpush1.bf16.msra.mxu0 0
    %962 = vmatprep.subr.bf16.mxu0 0
    %963 = vmatpush1.bf16.msra.mxu0 0
    %964 = vmatprep.subr.bf16.mxu0 0
    %965 = vmatpush1.bf16.msra.mxu0 0
    %966 = vmatprep.subr.bf16.mxu0 0
    %967 = vmatpush1.bf16.msra.mxu0 0
    %968 = vmatprep.subr.bf16.mxu0 0
    %969 = vmatpush1.bf16.msra.mxu0 0
    %970 = vmatprep.subr.bf16.mxu0 0
    %971 = vmatpush1.bf16.msra.mxu0 0
    %972 = vmatprep.subr.bf16.mxu0 0
    %973 = vmatpush1.bf16.msra.mxu0 0
    %974 = vmatprep.subr.bf16.mxu0 0
    %975 = vmatpush1.bf16.msra.mxu0 0
    %976 = vmatprep.subr.bf16.mxu0 0
    %977 = vmatpush1.bf16.msra.mxu0 0
    %978 = vmatprep.subr.bf16.mxu0 0
    %979 = vmatpush1.bf16.msra.mxu0 0
    %980 = vmatprep.subr.bf16.mxu0 0
    %981 = vmatpush1.bf16.msra.mxu0 0
    %982 = vmatprep.subr.bf16.mxu0 0
    %983 = vmatpush1.bf16.msra.mxu0 0
    %984 = vmatprep.mubr.bf16.mxu0 0
    %985 = vmatmul.mubr.bf16.gmra.mrb[0].mxu0 %v950
    %v986 = vpop.f32.mrb[0].mxu0
    %v987 = vadd.f32 %v128, %v986
    %v988 = vpop.f32.mrb[0].mxu0
    %v989 = vpop.f32.mrb[0].mxu0
    %v990 = vadd.f32 %v129, %v989
    %v991 = vpop.f32.mrb[0].mxu0
    %992 = vdwg.mxu0
    %s993 = scalar_lea.vmem [#allocation15], 32
    %994 = vst [vmem:[%s993] sm:$0xff] %v987
    %995 = vst [vmem:[%s993 + $0x8] sm:$0xff] %v990
    %v996 = vtanh.pop %v987
    %v997 = vtanh.pop %v990
    %v998 = vld [vmem:[#allocation10] sm:$0xf]
    %v999 = vld [vmem:[#allocation10 + $0x4] sm:$0xf]
    %v1000 = vld [vmem:[#allocation10 + $0x8] sm:$0xf]
    %v1001 = vld [vmem:[#allocation10 + $0xc] sm:$0xf]
    %v1002 = vpack.c.bf16 %v997, %v996
    %v1003 = vld [vmem:[#allocation9] sm:$0xf]
    %v1004 = vld [vmem:[#allocation9 + $0x4] sm:$0xf]
    %v1005 = vld [vmem:[#allocation9 + $0x8] sm:$0xf]
    %v1006 = vld [vmem:[#allocation9 + $0xc] sm:$0xf]
    %v1007 = vld [vmem:[#allocation9 + $0x10] sm:$0xf]
    %v1008 = vld [vmem:[#allocation9 + $0x14] sm:$0xf]
    %v1009 = vld [vmem:[#allocation9 + $0x18] sm:$0xf]
    %v1010 = vld [vmem:[#allocation9 + $0x1c] sm:$0xf]
    %v1011 = vld [vmem:[#allocation9 + $0x20] sm:$0xf]
    %v1012 = vld [vmem:[#allocation9 + $0x24] sm:$0xf]
    %v1013 = vld [vmem:[#allocation9 + $0x28] sm:$0xf]
    %v1014 = vld [vmem:[#allocation9 + $0x2c] sm:$0xf]
    %v1015 = vld [vmem:[#allocation9 + $0x30] sm:$0xf]
    %v1016 = vld [vmem:[#allocation9 + $0x34] sm:$0xf]
    %v1017 = vld [vmem:[#allocation9 + $0x38] sm:$0xf]
    %v1018 = vld [vmem:[#allocation9 + $0x3c] sm:$0xf]
    %v1035 = vunpack.c.l.b16 %v1003
    %v1036 = vunpack.c.l.b16 %v1004
    %v1037 = vunpack.c.l.b16 %v1005
    %v1038 = vunpack.c.l.b16 %v1006
    %v1039 = vunpack.c.l.b16 %v1007
    %v1040 = vunpack.c.l.b16 %v1008
    %v1041 = vunpack.c.l.b16 %v1009
    %v1042 = vunpack.c.l.b16 %v1010
    %v1043 = vunpack.c.l.b16 %v1011
    %v1044 = vunpack.c.l.b16 %v1012
    %v1045 = vunpack.c.l.b16 %v1013
    %v1046 = vunpack.c.l.b16 %v1014
    %v1047 = vunpack.c.l.b16 %v1015
    %v1048 = vunpack.c.l.b16 %v1016
    %v1049 = vunpack.c.l.b16 %v1017
    %v1050 = vunpack.c.l.b16 %v1018
    %v1051 = vpack.c.b16 %v1036, %v1035
    %v1052 = vpack.c.b16 %v1038, %v1037
    %v1053 = vpack.c.b16 %v1040, %v1039
    %v1054 = vpack.c.b16 %v1042, %v1041
    %v1055 = vpack.c.b16 %v1044, %v1043
    %v1056 = vpack.c.b16 %v1046, %v1045
    %v1057 = vpack.c.b16 %v1048, %v1047
    %v1058 = vpack.c.b16 %v1050, %v1049
    %1067 = vmatprep.subr.bf16.mxu0 0
    %1068 = vmatpush1.bf16.msra.mxu0 %v1051
    %1069 = vmatprep.subr.bf16.mxu0 0
    %1070 = vmatpush1.bf16.msra.mxu0 %v1052
    %1071 = vmatprep.subr.bf16.mxu0 0
    %1072 = vmatpush1.bf16.msra.mxu0 %v1053
    %1073 = vmatprep.subr.bf16.mxu0 0
    %1074 = vmatpush1.bf16.msra.mxu0 %v1054
    %1075 = vmatprep.subr.bf16.mxu0 0
    %1076 = vmatpush1.bf16.msra.mxu0 %v1055
    %1077 = vmatprep.subr.bf16.mxu0 0
    %1078 = vmatpush1.bf16.msra.mxu0 %v1056
    %1079 = vmatprep.subr.bf16.mxu0 0
    %1080 = vmatpush1.bf16.msra.mxu0 %v1057
    %1081 = vmatprep.subr.bf16.mxu0 0
    %1082 = vmatpush1.bf16.msra.mxu0 %v1058
    %1083 = vmatprep.subr.bf16.mxu0 0
    %1084 = vmatpush1.bf16.msra.mxu0 0
    %1085 = vmatprep.subr.bf16.mxu0 0
    %1086 = vmatpush1.bf16.msra.mxu0 0
    %1087 = vmatprep.subr.bf16.mxu0 0
    %1088 = vmatpush1.bf16.msra.mxu0 0
    %1089 = vmatprep.subr.bf16.mxu0 0
    %1090 = vmatpush1.bf16.msra.mxu0 0
    %1091 = vmatprep.subr.bf16.mxu0 0
    %1092 = vmatpush1.bf16.msra.mxu0 0
    %1093 = vmatprep.subr.bf16.mxu0 0
    %1094 = vmatpush1.bf16.msra.mxu0 0
    %1095 = vmatprep.subr.bf16.mxu0 0
    %1096 = vmatpush1.bf16.msra.mxu0 0
    %1097 = vmatprep.subr.bf16.mxu0 0
    %1098 = vmatpush1.bf16.msra.mxu0 0
    %1099 = vmatprep.mubr.bf16.mxu0 0
    %1100 = vmatmul.mubr.bf16.gmra.mrb[0].mxu0 %v1002
    %v1101 = vpop.f32.mrb[0].mxu0
    %v1102 = vadd.f32 0.0, %v1101
    %v1103 = vpop.f32.mrb[0].mxu0
    %v1104 = vpop.f32.mrb[0].mxu0
    %v1105 = vadd.f32 0.0, %v1104
    %v1106 = vpop.f32.mrb[0].mxu0
    %1107 = vdwg.mxu0
    %v1112 = vunpack.c.l.b16 %v998
    %v1113 = vunpack.c.l.b16 %v999
    %v1114 = vunpack.c.l.b16 %v1000
    %v1115 = vunpack.c.l.b16 %v1001
    %v1116 = vpack.c.b16 %v1113, %v1112
    %v1117 = vpack.c.b16 %v1115, %v1114
    %1120 = vmatprep.subr.bf16.mxu0 0
    %1121 = vmatpush1.bf16.msra.mxu0 %v1116
    %1122 = vmatprep.subr.bf16.mxu0 0
    %1123 = vmatpush1.bf16.msra.mxu0 %v1117
    %1124 = vmatprep.subr.bf16.mxu0 0
    %1125 = vmatpush1.bf16.msra.mxu0 0
    %1126 = vmatprep.subr.bf16.mxu0 0
    %1127 = vmatpush1.bf16.msra.mxu0 0
    %1128 = vmatprep.subr.bf16.mxu0 0
    %1129 = vmatpush1.bf16.msra.mxu0 0
    %1130 = vmatprep.subr.bf16.mxu0 0
    %1131 = vmatpush1.bf16.msra.mxu0 0
    %1132 = vmatprep.subr.bf16.mxu0 0
    %1133 = vmatpush1.bf16.msra.mxu0 0
    %1134 = vmatprep.subr.bf16.mxu0 0
    %1135 = vmatpush1.bf16.msra.mxu0 0
    %1136 = vmatprep.subr.bf16.mxu0 0
    %1137 = vmatpush1.bf16.msra.mxu0 0
    %1138 = vmatprep.subr.bf16.mxu0 0
    %1139 = vmatpush1.bf16.msra.mxu0 0
    %1140 = vmatprep.subr.bf16.mxu0 0
    %1141 = vmatpush1.bf16.msra.mxu0 0
    %1142 = vmatprep.subr.bf16.mxu0 0
    %1143 = vmatpush1.bf16.msra.mxu0 0
    %1144 = vmatprep.subr.bf16.mxu0 0
    %1145 = vmatpush1.bf16.msra.mxu0 0
    %1146 = vmatprep.subr.bf16.mxu0 0
    %1147 = vmatpush1.bf16.msra.mxu0 0
    %1148 = vmatprep.subr.bf16.mxu0 0
    %1149 = vmatpush1.bf16.msra.mxu0 0
    %1150 = vmatprep.subr.bf16.mxu0 0
    %1151 = vmatpush1.bf16.msra.mxu0 0
    %1152 = vmatprep.mubr.bf16.mxu0 0
    %1153 = vmatmul.mubr.bf16.gmra.mrb[0].mxu0 %v950
    %v1154 = vpop.f32.mrb[0].mxu0
    %v1155 = vadd.f32 %v1102, %v1154
    %v1156 = vpop.f32.mrb[0].mxu0
    %v1157 = vpop.f32.mrb[0].mxu0
    %v1158 = vadd.f32 %v1105, %v1157
    %v1159 = vpop.f32.mrb[0].mxu0
    %1160 = vdwg.mxu0
    %v1161 = vadd.f32 %v1155, %v126
    %v1162 = vadd.f32 %v1158, %v127
    %v1163 = vxor.u32 %v1161, 2147483648
    %v1164 = vxor.u32 %v1162, 2147483648
    %v1165 = vmul.f32 %v1163, 1.442695
    %v1166 = vpow.pop %v1165
    %v1167 = vmul.f32 %v1164, 1.442695
    %v1168 = vpow.pop %v1167
    %v1169 = vadd.f32 %v1166, 1.0
    %v1170 = vadd.f32 %v1168, 1.0
    %v1171 = vrcp.pop %v1169
    %v1172 = vmul.f32 1.0, %v1171
    %v1173 = vrcp.pop %v1170
    %v1174 = vmul.f32 1.0, %v1173
    %1177 = vrot.lane.b32.xlu0 %v1161, 32
    %v1178 = vpop.permute.xlu0 %1177
    %1179 = vrot.lane.b32.xlu0 %v1162, 32
    %v1180 = vpop.permute.xlu0 %1179
    %v1183 = vmul.f32 %v1172, %v1178
    %v1184 = vmul.f32 %v1174, %v1180
    %1187 = vrot.lane.b32.xlu0 %v1183, 64
    %v1188 = vpop.permute.xlu0 %1187
    %1189 = vrot.lane.b32.xlu0 %v1184, 64
    %v1190 = vpop.permute.xlu0 %1189
    %v1193 = vadd.f32 %v1161, %v1188
    %v1194 = vadd.f32 %v1162, %v1190
    %v1195 = vtanh.pop %v1193
    %v1196 = vtanh.pop %v1194
    %v1197 = vsub.f32 1.0, %v1172
    %v1198 = vsub.f32 1.0, %v1174
    %1201 = vrot.lane.b32.xlu0 %v1195, 96
    %v1202 = vpop.permute.xlu0 %1201
    %1203 = vrot.lane.b32.xlu0 %v1196, 96
    %v1204 = vpop.permute.xlu0 %1203
    %v1207 = vmul.f32 %v1197, %v1202
    %v1208 = vmul.f32 %v1198, %v1204
    %v1209 = vmul.f32 %v1172, %v927
    %v1210 = vmul.f32 %v1174, %v928
    %v1211 = vadd.f32 %v1207, %v1209
    %v1212 = vadd.f32 %v1208, %v1210
    %v1213 = vpack.c.bf16 %v1212, %v1211
    %v1214 = vld [vmem:[#allocation12] sm:$0xf]
    %v1215 = vld [vmem:[#allocation12 + $0x4] sm:$0xf]
    %v1216 = vld [vmem:[#allocation12 + $0x8] sm:$0xf]
    %v1217 = vld [vmem:[#allocation12 + $0xc] sm:$0xf]
    %1219 = vrot.lane.b32.xlu0 %v1213, 96
    %v1220 = vpop.permute.xlu0 %1219
    %v1225 = vunpack.c.l.b16 %v1214
    %v1226 = vunpack.c.l.b16 %v1215
    %v1227 = vunpack.c.l.b16 %v1216
    %v1228 = vunpack.c.l.b16 %v1217
    %v1229 = vpack.c.b16 %v1226, %v1225
    %v1230 = vpack.c.b16 %v1228, %v1227
    %v1234 = vsel %vm257, %v1220, 0
    %1236 = vmatprep.subr.bf16.mxu0 0
    %1237 = vmatpush1.bf16.msra.mxu0 %v1229
    %1238 = vmatprep.subr.bf16.mxu0 0
    %1239 = vmatpush1.bf16.msra.mxu0 %v1230
    %1240 = vmatprep.subr.bf16.mxu0 0
    %1241 = vmatpush1.bf16.msra.mxu0 0
    %1242 = vmatprep.subr.bf16.mxu0 0
    %1243 = vmatpush1.bf16.msra.mxu0 0
    %1244 = vmatprep.subr.bf16.mxu0 0
    %1245 = vmatpush1.bf16.msra.mxu0 0
    %1246 = vmatprep.subr.bf16.mxu0 0
    %1247 = vmatpush1.bf16.msra.mxu0 0
    %1248 = vmatprep.subr.bf16.mxu0 0
    %1249 = vmatpush1.bf16.msra.mxu0 0
    %1250 = vmatprep.subr.bf16.mxu0 0
    %1251 = vmatpush1.bf16.msra.mxu0 0
    %1252 = vmatprep.subr.bf16.mxu0 0
    %1253 = vmatpush1.bf16.msra.mxu0 0
    %1254 = vmatprep.subr.bf16.mxu0 0
    %1255 = vmatpush1.bf16.msra.mxu0 0
    %1256 = vmatprep.subr.bf16.mxu0 0
    %1257 = vmatpush1.bf16.msra.mxu0 0
    %1258 = vmatprep.subr.bf16.mxu0 0
    %1259 = vmatpush1.bf16.msra.mxu0 0
    %1260 = vmatprep.subr.bf16.mxu0 0
    %1261 = vmatpush1.bf16.msra.mxu0 0
    %1262 = vmatprep.subr.bf16.mxu0 0
    %1263 = vmatpush1.bf16.msra.mxu0 0
    %1264 = vmatprep.subr.bf16.mxu0 0
    %1265 = vmatpush1.bf16.msra.mxu0 0
    %1266 = vmatprep.subr.bf16.mxu0 0
    %1267 = vmatpush1.bf16.msra.mxu0 0
    %1268 = vmatprep.mubr.bf16.mxu0 0
    %1269 = vmatmul.mubr.bf16.gmra.mrb[0].mxu0 %v1234
    %v1270 = vpop.f32.mrb[0].mxu0
    %v1271 = vadd.f32 %v128, %v1270
    %v1272 = vpop.f32.mrb[0].mxu0
    %v1273 = vpop.f32.mrb[0].mxu0
    %v1274 = vadd.f32 %v129, %v1273
    %v1275 = vpop.f32.mrb[0].mxu0
    %1276 = vdwg.mxu0
    %s1277 = scalar_lea.vmem [#allocation15], 48
    %1278 = vst [vmem:[%s1277] sm:$0xff] %v1271
    %1279 = vst [vmem:[%s1277 + $0x8] sm:$0xff] %v1274
    %v1280 = vtanh.pop %v1271
    %v1281 = vtanh.pop %v1274
    %v1282 = vld [vmem:[#allocation10] sm:$0xf]
    %v1283 = vld [vmem:[#allocation10 + $0x4] sm:$0xf]
    %v1284 = vld [vmem:[#allocation10 + $0x8] sm:$0xf]
    %v1285 = vld [vmem:[#allocation10 + $0xc] sm:$0xf]
    %v1286 = vpack.c.bf16 %v1281, %v1280
    %v1287 = vld [vmem:[#allocation9] sm:$0xf]
    %v1288 = vld [vmem:[#allocation9 + $0x4] sm:$0xf]
    %v1289 = vld [vmem:[#allocation9 + $0x8] sm:$0xf]
    %v1290 = vld [vmem:[#allocation9 + $0xc] sm:$0xf]
    %v1291 = vld [vmem:[#allocation9 + $0x10] sm:$0xf]
    %v1292 = vld [vmem:[#allocation9 + $0x14] sm:$0xf]
    %v1293 = vld [vmem:[#allocation9 + $0x18] sm:$0xf]
    %v1294 = vld [vmem:[#allocation9 + $0x1c] sm:$0xf]
    %v1295 = vld [vmem:[#allocation9 + $0x20] sm:$0xf]
    %v1296 = vld [vmem:[#allocation9 + $0x24] sm:$0xf]
    %v1297 = vld [vmem:[#allocation9 + $0x28] sm:$0xf]
    %v1298 = vld [vmem:[#allocation9 + $0x2c] sm:$0xf]
    %v1299 = vld [vmem:[#allocation9 + $0x30] sm:$0xf]
    %v1300 = vld [vmem:[#allocation9 + $0x34] sm:$0xf]
    %v1301 = vld [vmem:[#allocation9 + $0x38] sm:$0xf]
    %v1302 = vld [vmem:[#allocation9 + $0x3c] sm:$0xf]
    %v1319 = vunpack.c.l.b16 %v1287
    %v1320 = vunpack.c.l.b16 %v1288
    %v1321 = vunpack.c.l.b16 %v1289
    %v1322 = vunpack.c.l.b16 %v1290
    %v1323 = vunpack.c.l.b16 %v1291
    %v1324 = vunpack.c.l.b16 %v1292
    %v1325 = vunpack.c.l.b16 %v1293
    %v1326 = vunpack.c.l.b16 %v1294
    %v1327 = vunpack.c.l.b16 %v1295
    %v1328 = vunpack.c.l.b16 %v1296
    %v1329 = vunpack.c.l.b16 %v1297
    %v1330 = vunpack.c.l.b16 %v1298
    %v1331 = vunpack.c.l.b16 %v1299
    %v1332 = vunpack.c.l.b16 %v1300
    %v1333 = vunpack.c.l.b16 %v1301
    %v1334 = vunpack.c.l.b16 %v1302
    %v1335 = vpack.c.b16 %v1320, %v1319
    %v1336 = vpack.c.b16 %v1322, %v1321
    %v1337 = vpack.c.b16 %v1324, %v1323
    %v1338 = vpack.c.b16 %v1326, %v1325
    %v1339 = vpack.c.b16 %v1328, %v1327
    %v1340 = vpack.c.b16 %v1330, %v1329
    %v1341 = vpack.c.b16 %v1332, %v1331
    %v1342 = vpack.c.b16 %v1334, %v1333
    %1351 = vmatprep.subr.bf16.mxu0 0
    %1352 = vmatpush1.bf16.msra.mxu0 %v1335
    %1353 = vmatprep.subr.bf16.mxu0 0
    %1354 = vmatpush1.bf16.msra.mxu0 %v1336
    %1355 = vmatprep.subr.bf16.mxu0 0
    %1356 = vmatpush1.bf16.msra.mxu0 %v1337
    %1357 = vmatprep.subr.bf16.mxu0 0
    %1358 = vmatpush1.bf16.msra.mxu0 %v1338
    %1359 = vmatprep.subr.bf16.mxu0 0
    %1360 = vmatpush1.bf16.msra.mxu0 %v1339
    %1361 = vmatprep.subr.bf16.mxu0 0
    %1362 = vmatpush1.bf16.msra.mxu0 %v1340
    %1363 = vmatprep.subr.bf16.mxu0 0
    %1364 = vmatpush1.bf16.msra.mxu0 %v1341
    %1365 = vmatprep.subr.bf16.mxu0 0
    %1366 = vmatpush1.bf16.msra.mxu0 %v1342
    %1367 = vmatprep.subr.bf16.mxu0 0
    %1368 = vmatpush1.bf16.msra.mxu0 0
    %1369 = vmatprep.subr.bf16.mxu0 0
    %1370 = vmatpush1.bf16.msra.mxu0 0
    %1371 = vmatprep.subr.bf16.mxu0 0
    %1372 = vmatpush1.bf16.msra.mxu0 0
    %1373 = vmatprep.subr.bf16.mxu0 0
    %1374 = vmatpush1.bf16.msra.mxu0 0
    %1375 = vmatprep.subr.bf16.mxu0 0
    %1376 = vmatpush1.bf16.msra.mxu0 0
    %1377 = vmatprep.subr.bf16.mxu0 0
    %1378 = vmatpush1.bf16.msra.mxu0 0
    %1379 = vmatprep.subr.bf16.mxu0 0
    %1380 = vmatpush1.bf16.msra.mxu0 0
    %1381 = vmatprep.subr.bf16.mxu0 0
    %1382 = vmatpush1.bf16.msra.mxu0 0
    %1383 = vmatprep.mubr.bf16.mxu0 0
    %1384 = vmatmul.mubr.bf16.gmra.mrb[0].mxu0 %v1286
    %v1385 = vpop.f32.mrb[0].mxu0
    %v1386 = vadd.f32 0.0, %v1385
    %v1387 = vpop.f32.mrb[0].mxu0
    %v1388 = vpop.f32.mrb[0].mxu0
    %v1389 = vadd.f32 0.0, %v1388
    %v1390 = vpop.f32.mrb[0].mxu0
    %1391 = vdwg.mxu0
    %v1396 = vunpack.c.l.b16 %v1282
    %v1397 = vunpack.c.l.b16 %v1283
    %v1398 = vunpack.c.l.b16 %v1284
    %v1399 = vunpack.c.l.b16 %v1285
    %v1400 = vpack.c.b16 %v1397, %v1396
    %v1401 = vpack.c.b16 %v1399, %v1398
    %1404 = vmatprep.subr.bf16.mxu0 0
    %1405 = vmatpush1.bf16.msra.mxu0 %v1400
    %1406 = vmatprep.subr.bf16.mxu0 0
    %1407 = vmatpush1.bf16.msra.mxu0 %v1401
    %1408 = vmatprep.subr.bf16.mxu0 0
    %1409 = vmatpush1.bf16.msra.mxu0 0
    %1410 = vmatprep.subr.bf16.mxu0 0
    %1411 = vmatpush1.bf16.msra.mxu0 0
    %1412 = vmatprep.subr.bf16.mxu0 0
    %1413 = vmatpush1.bf16.msra.mxu0 0
    %1414 = vmatprep.subr.bf16.mxu0 0
    %1415 = vmatpush1.bf16.msra.mxu0 0
    %1416 = vmatprep.subr.bf16.mxu0 0
    %1417 = vmatpush1.bf16.msra.mxu0 0
    %1418 = vmatprep.subr.bf16.mxu0 0
    %1419 = vmatpush1.bf16.msra.mxu0 0
    %1420 = vmatprep.subr.bf16.mxu0 0
    %1421 = vmatpush1.bf16.msra.mxu0 0
    %1422 = vmatprep.subr.bf16.mxu0 0
    %1423 = vmatpush1.bf16.msra.mxu0 0
    %1424 = vmatprep.subr.bf16.mxu0 0
    %1425 = vmatpush1.bf16.msra.mxu0 0
    %1426 = vmatprep.subr.bf16.mxu0 0
    %1427 = vmatpush1.bf16.msra.mxu0 0
    %1428 = vmatprep.subr.bf16.mxu0 0
    %1429 = vmatpush1.bf16.msra.mxu0 0
    %1430 = vmatprep.subr.bf16.mxu0 0
    %1431 = vmatpush1.bf16.msra.mxu0 0
    %1432 = vmatprep.subr.bf16.mxu0 0
    %1433 = vmatpush1.bf16.msra.mxu0 0
    %1434 = vmatprep.subr.bf16.mxu0 0
    %1435 = vmatpush1.bf16.msra.mxu0 0
    %1436 = vmatprep.mubr.bf16.mxu0 0
    %1437 = vmatmul.mubr.bf16.gmra.mrb[0].mxu0 %v1234
    %v1438 = vpop.f32.mrb[0].mxu0
    %v1439 = vadd.f32 %v1386, %v1438
    %v1440 = vpop.f32.mrb[0].mxu0
    %v1441 = vpop.f32.mrb[0].mxu0
    %v1442 = vadd.f32 %v1389, %v1441
    %v1443 = vpop.f32.mrb[0].mxu0
    %1444 = vdwg.mxu0
    %v1445 = vadd.f32 %v1439, %v126
    %v1446 = vadd.f32 %v1442, %v127
    %v1447 = vxor.u32 %v1445, 2147483648
    %v1448 = vxor.u32 %v1446, 2147483648
    %v1449 = vmul.f32 %v1447, 1.442695
    %v1450 = vpow.pop %v1449
    %v1451 = vmul.f32 %v1448, 1.442695
    %v1452 = vpow.pop %v1451
    %v1453 = vadd.f32 %v1450, 1.0
    %v1454 = vadd.f32 %v1452, 1.0
    %v1455 = vrcp.pop %v1453
    %v1456 = vmul.f32 1.0, %v1455
    %v1457 = vrcp.pop %v1454
    %v1458 = vmul.f32 1.0, %v1457
    %1461 = vrot.lane.b32.xlu0 %v1445, 32
    %v1462 = vpop.permute.xlu0 %1461
    %1463 = vrot.lane.b32.xlu0 %v1446, 32
    %v1464 = vpop.permute.xlu0 %1463
    %v1467 = vmul.f32 %v1456, %v1462
    %v1468 = vmul.f32 %v1458, %v1464
    %1471 = vrot.lane.b32.xlu0 %v1467, 64
    %v1472 = vpop.permute.xlu0 %1471
    %1473 = vrot.lane.b32.xlu0 %v1468, 64
    %v1474 = vpop.permute.xlu0 %1473
    %v1477 = vadd.f32 %v1445, %v1472
    %v1478 = vadd.f32 %v1446, %v1474
    %v1479 = vtanh.pop %v1477
    %v1480 = vtanh.pop %v1478
    %v1481 = vsub.f32 1.0, %v1456
    %v1482 = vsub.f32 1.0, %v1458
    %1485 = vrot.lane.b32.xlu0 %v1479, 96
    %v1486 = vpop.permute.xlu0 %1485
    %1487 = vrot.lane.b32.xlu0 %v1480, 96
    %v1488 = vpop.permute.xlu0 %1487
    %v1491 = vmul.f32 %v1481, %v1486
    %v1492 = vmul.f32 %v1482, %v1488
    %v1493 = vmul.f32 %v1456, %v1211
    %v1494 = vmul.f32 %v1458, %v1212
    %v1495 = vadd.f32 %v1491, %v1493
    %v1496 = vadd.f32 %v1492, %v1494
    %v1497 = vpack.c.bf16 %v1496, %v1495
    %v1498 = vld [vmem:[#allocation12] sm:$0xf]
    %v1499 = vld [vmem:[#allocation12 + $0x4] sm:$0xf]
    %v1500 = vld [vmem:[#allocation12 + $0x8] sm:$0xf]
    %v1501 = vld [vmem:[#allocation12 + $0xc] sm:$0xf]
    %1503 = vrot.lane.b32.xlu0 %v1497, 96
    %v1504 = vpop.permute.xlu0 %1503
    %v1509 = vunpack.c.l.b16 %v1498
    %v1510 = vunpack.c.l.b16 %v1499
    %v1511 = vunpack.c.l.b16 %v1500
    %v1512 = vunpack.c.l.b16 %v1501
    %v1513 = vpack.c.b16 %v1510, %v1509
    %v1514 = vpack.c.b16 %v1512, %v1511
    %v1518 = vsel %vm257, %v1504, 0
    %1520 = vmatprep.subr.bf16.mxu0 0
    %1521 = vmatpush1.bf16.msra.mxu0 %v1513
    %1522 = vmatprep.subr.bf16.mxu0 0
    %1523 = vmatpush1.bf16.msra.mxu0 %v1514
    %1524 = vmatprep.subr.bf16.mxu0 0
    %1525 = vmatpush1.bf16.msra.mxu0 0
    %1526 = vmatprep.subr.bf16.mxu0 0
    %1527 = vmatpush1.bf16.msra.mxu0 0
    %1528 = vmatprep.subr.bf16.mxu0 0
    %1529 = vmatpush1.bf16.msra.mxu0 0
    %1530 = vmatprep.subr.bf16.mxu0 0
    %1531 = vmatpush1.bf16.msra.mxu0 0
    %1532 = vmatprep.subr.bf16.mxu0 0
    %1533 = vmatpush1.bf16.msra.mxu0 0
    %1534 = vmatprep.subr.bf16.mxu0 0
    %1535 = vmatpush1.bf16.msra.mxu0 0
    %1536 = vmatprep.subr.bf16.mxu0 0
    %1537 = vmatpush1.bf16.msra.mxu0 0
    %1538 = vmatprep.subr.bf16.mxu0 0
    %1539 = vmatpush1.bf16.msra.mxu0 0
    %1540 = vmatprep.subr.bf16.mxu0 0
    %1541 = vmatpush1.bf16.msra.mxu0 0
    %1542 = vmatprep.subr.bf16.mxu0 0
    %1543 = vmatpush1.bf16.msra.mxu0 0
    %1544 = vmatprep.subr.bf16.mxu0 0
    %1545 = vmatpush1.bf16.msra.mxu0 0
    %1546 = vmatprep.subr.bf16.mxu0 0
    %1547 = vmatpush1.bf16.msra.mxu0 0
    %1548 = vmatprep.subr.bf16.mxu0 0
    %1549 = vmatpush1.bf16.msra.mxu0 0
    %1550 = vmatprep.subr.bf16.mxu0 0
    %1551 = vmatpush1.bf16.msra.mxu0 0
    %1552 = vmatprep.mubr.bf16.mxu0 0
    %1553 = vmatmul.mubr.bf16.gmra.mrb[0].mxu0 %v1518
    %v1554 = vpop.f32.mrb[0].mxu0
    %v1555 = vadd.f32 %v128, %v1554
    %v1556 = vpop.f32.mrb[0].mxu0
    %v1557 = vpop.f32.mrb[0].mxu0
    %v1558 = vadd.f32 %v129, %v1557
    %v1559 = vpop.f32.mrb[0].mxu0
    %1560 = vdwg.mxu0
    %s1561 = scalar_lea.vmem [#allocation15], 64
    %1562 = vst [vmem:[%s1561] sm:$0xff] %v1555
    %1563 = vst [vmem:[%s1561 + $0x8] sm:$0xff] %v1558
    %v1564 = vtanh.pop %v1555
    %v1565 = vtanh.pop %v1558
    %v1566 = vld [vmem:[#allocation10] sm:$0xf]
    %v1567 = vld [vmem:[#allocation10 + $0x4] sm:$0xf]
    %v1568 = vld [vmem:[#allocation10 + $0x8] sm:$0xf]
    %v1569 = vld [vmem:[#allocation10 + $0xc] sm:$0xf]
    %v1570 = vpack.c.bf16 %v1565, %v1564
    %v1571 = vld [vmem:[#allocation9] sm:$0xf]
    %v1572 = vld [vmem:[#allocation9 + $0x4] sm:$0xf]
    %v1573 = vld [vmem:[#allocation9 + $0x8] sm:$0xf]
    %v1574 = vld [vmem:[#allocation9 + $0xc] sm:$0xf]
    %v1575 = vld [vmem:[#allocation9 + $0x10] sm:$0xf]
    %v1576 = vld [vmem:[#allocation9 + $0x14] sm:$0xf]
    %v1577 = vld [vmem:[#allocation9 + $0x18] sm:$0xf]
    %v1578 = vld [vmem:[#allocation9 + $0x1c] sm:$0xf]
    %v1579 = vld [vmem:[#allocation9 + $0x20] sm:$0xf]
    %v1580 = vld [vmem:[#allocation9 + $0x24] sm:$0xf]
    %v1581 = vld [vmem:[#allocation9 + $0x28] sm:$0xf]
    %v1582 = vld [vmem:[#allocation9 + $0x2c] sm:$0xf]
    %v1583 = vld [vmem:[#allocation9 + $0x30] sm:$0xf]
    %v1584 = vld [vmem:[#allocation9 + $0x34] sm:$0xf]
    %v1585 = vld [vmem:[#allocation9 + $0x38] sm:$0xf]
    %v1586 = vld [vmem:[#allocation9 + $0x3c] sm:$0xf]
    %v1603 = vunpack.c.l.b16 %v1571
    %v1604 = vunpack.c.l.b16 %v1572
    %v1605 = vunpack.c.l.b16 %v1573
    %v1606 = vunpack.c.l.b16 %v1574
    %v1607 = vunpack.c.l.b16 %v1575
    %v1608 = vunpack.c.l.b16 %v1576
    %v1609 = vunpack.c.l.b16 %v1577
    %v1610 = vunpack.c.l.b16 %v1578
    %v1611 = vunpack.c.l.b16 %v1579
    %v1612 = vunpack.c.l.b16 %v1580
    %v1613 = vunpack.c.l.b16 %v1581
    %v1614 = vunpack.c.l.b16 %v1582
    %v1615 = vunpack.c.l.b16 %v1583
    %v1616 = vunpack.c.l.b16 %v1584
    %v1617 = vunpack.c.l.b16 %v1585
    %v1618 = vunpack.c.l.b16 %v1586
    %v1619 = vpack.c.b16 %v1604, %v1603
    %v1620 = vpack.c.b16 %v1606, %v1605
    %v1621 = vpack.c.b16 %v1608, %v1607
    %v1622 = vpack.c.b16 %v1610, %v1609
    %v1623 = vpack.c.b16 %v1612, %v1611
    %v1624 = vpack.c.b16 %v1614, %v1613
    %v1625 = vpack.c.b16 %v1616, %v1615
    %v1626 = vpack.c.b16 %v1618, %v1617
    %1635 = vmatprep.subr.bf16.mxu0 0
    %1636 = vmatpush1.bf16.msra.mxu0 %v1619
    %1637 = vmatprep.subr.bf16.mxu0 0
    %1638 = vmatpush1.bf16.msra.mxu0 %v1620
    %1639 = vmatprep.subr.bf16.mxu0 0
    %1640 = vmatpush1.bf16.msra.mxu0 %v1621
    %1641 = vmatprep.subr.bf16.mxu0 0
    %1642 = vmatpush1.bf16.msra.mxu0 %v1622
    %1643 = vmatprep.subr.bf16.mxu0 0
    %1644 = vmatpush1.bf16.msra.mxu0 %v1623
    %1645 = vmatprep.subr.bf16.mxu0 0
    %1646 = vmatpush1.bf16.msra.mxu0 %v1624
    %1647 = vmatprep.subr.bf16.mxu0 0
    %1648 = vmatpush1.bf16.msra.mxu0 %v1625
    %1649 = vmatprep.subr.bf16.mxu0 0
    %1650 = vmatpush1.bf16.msra.mxu0 %v1626
    %1651 = vmatprep.subr.bf16.mxu0 0
    %1652 = vmatpush1.bf16.msra.mxu0 0
    %1653 = vmatprep.subr.bf16.mxu0 0
    %1654 = vmatpush1.bf16.msra.mxu0 0
    %1655 = vmatprep.subr.bf16.mxu0 0
    %1656 = vmatpush1.bf16.msra.mxu0 0
    %1657 = vmatprep.subr.bf16.mxu0 0
    %1658 = vmatpush1.bf16.msra.mxu0 0
    %1659 = vmatprep.subr.bf16.mxu0 0
    %1660 = vmatpush1.bf16.msra.mxu0 0
    %1661 = vmatprep.subr.bf16.mxu0 0
    %1662 = vmatpush1.bf16.msra.mxu0 0
    %1663 = vmatprep.subr.bf16.mxu0 0
    %1664 = vmatpush1.bf16.msra.mxu0 0
    %1665 = vmatprep.subr.bf16.mxu0 0
    %1666 = vmatpush1.bf16.msra.mxu0 0
    %1667 = vmatprep.mubr.bf16.mxu0 0
    %1668 = vmatmul.mubr.bf16.gmra.mrb[0].mxu0 %v1570
    %v1669 = vpop.f32.mrb[0].mxu0
    %v1670 = vadd.f32 0.0, %v1669
    %v1671 = vpop.f32.mrb[0].mxu0
    %v1672 = vpop.f32.mrb[0].mxu0
    %v1673 = vadd.f32 0.0, %v1672
    %v1674 = vpop.f32.mrb[0].mxu0
    %1675 = vdwg.mxu0
    %v1680 = vunpack.c.l.b16 %v1566
    %v1681 = vunpack.c.l.b16 %v1567
    %v1682 = vunpack.c.l.b16 %v1568
    %v1683 = vunpack.c.l.b16 %v1569
    %v1684 = vpack.c.b16 %v1681, %v1680
    %v1685 = vpack.c.b16 %v1683, %v1682
    %1688 = vmatprep.subr.bf16.mxu0 0
    %1689 = vmatpush1.bf16.msra.mxu0 %v1684
    %1690 = vmatprep.subr.bf16.mxu0 0
    %1691 = vmatpush1.bf16.msra.mxu0 %v1685
    %1692 = vmatprep.subr.bf16.mxu0 0
    %1693 = vmatpush1.bf16.msra.mxu0 0
    %1694 = vmatprep.subr.bf16.mxu0 0
    %1695 = vmatpush1.bf16.msra.mxu0 0
    %1696 = vmatprep.subr.bf16.mxu0 0
    %1697 = vmatpush1.bf16.msra.mxu0 0
    %1698 = vmatprep.subr.bf16.mxu0 0
    %1699 = vmatpush1.bf16.msra.mxu0 0
    %1700 = vmatprep.subr.bf16.mxu0 0
    %1701 = vmatpush1.bf16.msra.mxu0 0
    %1702 = vmatprep.subr.bf16.mxu0 0
    %1703 = vmatpush1.bf16.msra.mxu0 0
    %1704 = vmatprep.subr.bf16.mxu0 0
    %1705 = vmatpush1.bf16.msra.mxu0 0
    %1706 = vmatprep.subr.bf16.mxu0 0
    %1707 = vmatpush1.bf16.msra.mxu0 0
    %1708 = vmatprep.subr.bf16.mxu0 0
    %1709 = vmatpush1.bf16.msra.mxu0 0
    %1710 = vmatprep.subr.bf16.mxu0 0
    %1711 = vmatpush1.bf16.msra.mxu0 0
    %1712 = vmatprep.subr.bf16.mxu0 0
    %1713 = vmatpush1.bf16.msra.mxu0 0
    %1714 = vmatprep.subr.bf16.mxu0 0
    %1715 = vmatpush1.bf16.msra.mxu0 0
    %1716 = vmatprep.subr.bf16.mxu0 0
    %1717 = vmatpush1.bf16.msra.mxu0 0
    %1718 = vmatprep.subr.bf16.mxu0 0
    %1719 = vmatpush1.bf16.msra.mxu0 0
    %1720 = vmatprep.mubr.bf16.mxu0 0
    %1721 = vmatmul.mubr.bf16.gmra.mrb[0].mxu0 %v1518
    %v1722 = vpop.f32.mrb[0].mxu0
    %v1723 = vadd.f32 %v1670, %v1722
    %v1724 = vpop.f32.mrb[0].mxu0
    %v1725 = vpop.f32.mrb[0].mxu0
    %v1726 = vadd.f32 %v1673, %v1725
    %v1727 = vpop.f32.mrb[0].mxu0
    %1728 = vdwg.mxu0
    %v1729 = vadd.f32 %v1723, %v126
    %v1730 = vadd.f32 %v1726, %v127
    %v1731 = vxor.u32 %v1729, 2147483648
    %v1732 = vxor.u32 %v1730, 2147483648
    %v1733 = vmul.f32 %v1731, 1.442695
    %v1734 = vpow.pop %v1733
    %v1735 = vmul.f32 %v1732, 1.442695
    %v1736 = vpow.pop %v1735
    %v1737 = vadd.f32 %v1734, 1.0
    %v1738 = vadd.f32 %v1736, 1.0
    %v1739 = vrcp.pop %v1737
    %v1740 = vmul.f32 1.0, %v1739
    %v1741 = vrcp.pop %v1738
    %v1742 = vmul.f32 1.0, %v1741
    %1745 = vrot.lane.b32.xlu0 %v1729, 32
    %v1746 = vpop.permute.xlu0 %1745
    %1747 = vrot.lane.b32.xlu0 %v1730, 32
    %v1748 = vpop.permute.xlu0 %1747
    %v1751 = vmul.f32 %v1740, %v1746
    %v1752 = vmul.f32 %v1742, %v1748
    %1755 = vrot.lane.b32.xlu0 %v1751, 64
    %v1756 = vpop.permute.xlu0 %1755
    %1757 = vrot.lane.b32.xlu0 %v1752, 64
    %v1758 = vpop.permute.xlu0 %1757
    %v1761 = vadd.f32 %v1729, %v1756
    %v1762 = vadd.f32 %v1730, %v1758
    %v1763 = vtanh.pop %v1761
    %v1764 = vtanh.pop %v1762
    %v1765 = vsub.f32 1.0, %v1740
    %v1766 = vsub.f32 1.0, %v1742
    %1769 = vrot.lane.b32.xlu0 %v1763, 96
    %v1770 = vpop.permute.xlu0 %1769
    %1771 = vrot.lane.b32.xlu0 %v1764, 96
    %v1772 = vpop.permute.xlu0 %1771
    %v1775 = vmul.f32 %v1765, %v1770
    %v1776 = vmul.f32 %v1766, %v1772
    %v1777 = vmul.f32 %v1740, %v1495
    %v1778 = vmul.f32 %v1742, %v1496
    %v1779 = vadd.f32 %v1775, %v1777
    %v1780 = vadd.f32 %v1776, %v1778
    %v1781 = vpack.c.bf16 %v1780, %v1779
    %v1782 = vld [vmem:[#allocation12] sm:$0xf]
    %v1783 = vld [vmem:[#allocation12 + $0x4] sm:$0xf]
    %v1784 = vld [vmem:[#allocation12 + $0x8] sm:$0xf]
    %v1785 = vld [vmem:[#allocation12 + $0xc] sm:$0xf]
    %1787 = vrot.lane.b32.xlu0 %v1781, 96
    %v1788 = vpop.permute.xlu0 %1787
    %v1793 = vunpack.c.l.b16 %v1782
    %v1794 = vunpack.c.l.b16 %v1783
    %v1795 = vunpack.c.l.b16 %v1784
    %v1796 = vunpack.c.l.b16 %v1785
    %v1797 = vpack.c.b16 %v1794, %v1793
    %v1798 = vpack.c.b16 %v1796, %v1795
    %v1802 = vsel %vm257, %v1788, 0
    %1804 = vmatprep.subr.bf16.mxu0 0
    %1805 = vmatpush1.bf16.msra.mxu0 %v1797
    %1806 = vmatprep.subr.bf16.mxu0 0
    %1807 = vmatpush1.bf16.msra.mxu0 %v1798
    %1808 = vmatprep.subr.bf16.mxu0 0
    %1809 = vmatpush1.bf16.msra.mxu0 0
    %1810 = vmatprep.subr.bf16.mxu0 0
    %1811 = vmatpush1.bf16.msra.mxu0 0
    %1812 = vmatprep.subr.bf16.mxu0 0
    %1813 = vmatpush1.bf16.msra.mxu0 0
    %1814 = vmatprep.subr.bf16.mxu0 0
    %1815 = vmatpush1.bf16.msra.mxu0 0
    %1816 = vmatprep.subr.bf16.mxu0 0
    %1817 = vmatpush1.bf16.msra.mxu0 0
    %1818 = vmatprep.subr.bf16.mxu0 0
    %1819 = vmatpush1.bf16.msra.mxu0 0
    %1820 = vmatprep.subr.bf16.mxu0 0
    %1821 = vmatpush1.bf16.msra.mxu0 0
    %1822 = vmatprep.subr.bf16.mxu0 0
    %1823 = vmatpush1.bf16.msra.mxu0 0
    %1824 = vmatprep.subr.bf16.mxu0 0
    %1825 = vmatpush1.bf16.msra.mxu0 0
    %1826 = vmatprep.subr.bf16.mxu0 0
    %1827 = vmatpush1.bf16.msra.mxu0 0
    %1828 = vmatprep.subr.bf16.mxu0 0
    %1829 = vmatpush1.bf16.msra.mxu0 0
    %1830 = vmatprep.subr.bf16.mxu0 0
    %1831 = vmatpush1.bf16.msra.mxu0 0
    %1832 = vmatprep.subr.bf16.mxu0 0
    %1833 = vmatpush1.bf16.msra.mxu0 0
    %1834 = vmatprep.subr.bf16.mxu0 0
    %1835 = vmatpush1.bf16.msra.mxu0 0
    %1836 = vmatprep.mubr.bf16.mxu0 0
    %1837 = vmatmul.mubr.bf16.gmra.mrb[0].mxu0 %v1802
    %v1838 = vpop.f32.mrb[0].mxu0
    %v1839 = vadd.f32 %v128, %v1838
    %v1840 = vpop.f32.mrb[0].mxu0
    %v1841 = vpop.f32.mrb[0].mxu0
    %v1842 = vadd.f32 %v129, %v1841
    %v1843 = vpop.f32.mrb[0].mxu0
    %1844 = vdwg.mxu0
    %s1845 = scalar_lea.vmem [#allocation15], 80
    %1846 = vst [vmem:[%s1845] sm:$0xff] %v1839
    %1847 = vst [vmem:[%s1845 + $0x8] sm:$0xff] %v1842
    %v1848 = vtanh.pop %v1839
    %v1849 = vtanh.pop %v1842
    %v1850 = vld [vmem:[#allocation10] sm:$0xf]
    %v1851 = vld [vmem:[#allocation10 + $0x4] sm:$0xf]
    %v1852 = vld [vmem:[#allocation10 + $0x8] sm:$0xf]
    %v1853 = vld [vmem:[#allocation10 + $0xc] sm:$0xf]
    %v1854 = vpack.c.bf16 %v1849, %v1848
    %v1855 = vld [vmem:[#allocation9] sm:$0xf]
    %v1856 = vld [vmem:[#allocation9 + $0x4] sm:$0xf]
    %v1857 = vld [vmem:[#allocation9 + $0x8] sm:$0xf]
    %v1858 = vld [vmem:[#allocation9 + $0xc] sm:$0xf]
    %v1859 = vld [vmem:[#allocation9 + $0x10] sm:$0xf]
    %v1860 = vld [vmem:[#allocation9 + $0x14] sm:$0xf]
    %v1861 = vld [vmem:[#allocation9 + $0x18] sm:$0xf]
    %v1862 = vld [vmem:[#allocation9 + $0x1c] sm:$0xf]
    %v1863 = vld [vmem:[#allocation9 + $0x20] sm:$0xf]
    %v1864 = vld [vmem:[#allocation9 + $0x24] sm:$0xf]
    %v1865 = vld [vmem:[#allocation9 + $0x28] sm:$0xf]
    %v1866 = vld [vmem:[#allocation9 + $0x2c] sm:$0xf]
    %v1867 = vld [vmem:[#allocation9 + $0x30] sm:$0xf]
    %v1868 = vld [vmem:[#allocation9 + $0x34] sm:$0xf]
    %v1869 = vld [vmem:[#allocation9 + $0x38] sm:$0xf]
    %v1870 = vld [vmem:[#allocation9 + $0x3c] sm:$0xf]
    %v1887 = vunpack.c.l.b16 %v1855
    %v1888 = vunpack.c.l.b16 %v1856
    %v1889 = vunpack.c.l.b16 %v1857
    %v1890 = vunpack.c.l.b16 %v1858
    %v1891 = vunpack.c.l.b16 %v1859
    %v1892 = vunpack.c.l.b16 %v1860
    %v1893 = vunpack.c.l.b16 %v1861
    %v1894 = vunpack.c.l.b16 %v1862
    %v1895 = vunpack.c.l.b16 %v1863
    %v1896 = vunpack.c.l.b16 %v1864
    %v1897 = vunpack.c.l.b16 %v1865
    %v1898 = vunpack.c.l.b16 %v1866
    %v1899 = vunpack.c.l.b16 %v1867
    %v1900 = vunpack.c.l.b16 %v1868
    %v1901 = vunpack.c.l.b16 %v1869
    %v1902 = vunpack.c.l.b16 %v1870
    %v1903 = vpack.c.b16 %v1888, %v1887
    %v1904 = vpack.c.b16 %v1890, %v1889
    %v1905 = vpack.c.b16 %v1892, %v1891
    %v1906 = vpack.c.b16 %v1894, %v1893
    %v1907 = vpack.c.b16 %v1896, %v1895
    %v1908 = vpack.c.b16 %v1898, %v1897
    %v1909 = vpack.c.b16 %v1900, %v1899
    %v1910 = vpack.c.b16 %v1902, %v1901
    %1919 = vmatprep.subr.bf16.mxu0 0
    %1920 = vmatpush1.bf16.msra.mxu0 %v1903
    %1921 = vmatprep.subr.bf16.mxu0 0
    %1922 = vmatpush1.bf16.msra.mxu0 %v1904
    %1923 = vmatprep.subr.bf16.mxu0 0
    %1924 = vmatpush1.bf16.msra.mxu0 %v1905
    %1925 = vmatprep.subr.bf16.mxu0 0
    %1926 = vmatpush1.bf16.msra.mxu0 %v1906
    %1927 = vmatprep.subr.bf16.mxu0 0
    %1928 = vmatpush1.bf16.msra.mxu0 %v1907
    %1929 = vmatprep.subr.bf16.mxu0 0
    %1930 = vmatpush1.bf16.msra.mxu0 %v1908
    %1931 = vmatprep.subr.bf16.mxu0 0
    %1932 = vmatpush1.bf16.msra.mxu0 %v1909
    %1933 = vmatprep.subr.bf16.mxu0 0
    %1934 = vmatpush1.bf16.msra.mxu0 %v1910
    %1935 = vmatprep.subr.bf16.mxu0 0
    %1936 = vmatpush1.bf16.msra.mxu0 0
    %1937 = vmatprep.subr.bf16.mxu0 0
    %1938 = vmatpush1.bf16.msra.mxu0 0
    %1939 = vmatprep.subr.bf16.mxu0 0
    %1940 = vmatpush1.bf16.msra.mxu0 0
    %1941 = vmatprep.subr.bf16.mxu0 0
    %1942 = vmatpush1.bf16.msra.mxu0 0
    %1943 = vmatprep.subr.bf16.mxu0 0
    %1944 = vmatpush1.bf16.msra.mxu0 0
    %1945 = vmatprep.subr.bf16.mxu0 0
    %1946 = vmatpush1.bf16.msra.mxu0 0
    %1947 = vmatprep.subr.bf16.mxu0 0
    %1948 = vmatpush1.bf16.msra.mxu0 0
    %1949 = vmatprep.subr.bf16.mxu0 0
    %1950 = vmatpush1.bf16.msra.mxu0 0
    %1951 = vmatprep.mubr.bf16.mxu0 0
    %1952 = vmatmul.mubr.bf16.gmra.mrb[0].mxu0 %v1854
    %v1953 = vpop.f32.mrb[0].mxu0
    %v1954 = vadd.f32 0.0, %v1953
    %v1955 = vpop.f32.mrb[0].mxu0
    %v1956 = vpop.f32.mrb[0].mxu0
    %v1957 = vadd.f32 0.0, %v1956
    %v1958 = vpop.f32.mrb[0].mxu0
    %1959 = vdwg.mxu0
    %v1964 = vunpack.c.l.b16 %v1850
    %v1965 = vunpack.c.l.b16 %v1851
    %v1966 = vunpack.c.l.b16 %v1852
    %v1967 = vunpack.c.l.b16 %v1853
    %v1968 = vpack.c.b16 %v1965, %v1964
    %v1969 = vpack.c.b16 %v1967, %v1966
    %1972 = vmatprep.subr.bf16.mxu0 0
    %1973 = vmatpush1.bf16.msra.mxu0 %v1968
    %1974 = vmatprep.subr.bf16.mxu0 0
    %1975 = vmatpush1.bf16.msra.mxu0 %v1969
    %1976 = vmatprep.subr.bf16.mxu0 0
    %1977 = vmatpush1.bf16.msra.mxu0 0
    %1978 = vmatprep.subr.bf16.mxu0 0
    %1979 = vmatpush1.bf16.msra.mxu0 0
    %1980 = vmatprep.subr.bf16.mxu0 0
    %1981 = vmatpush1.bf16.msra.mxu0 0
    %1982 = vmatprep.subr.bf16.mxu0 0
    %1983 = vmatpush1.bf16.msra.mxu0 0
    %1984 = vmatprep.subr.bf16.mxu0 0
    %1985 = vmatpush1.bf16.msra.mxu0 0
    %1986 = vmatprep.subr.bf16.mxu0 0
    %1987 = vmatpush1.bf16.msra.mxu0 0
    %1988 = vmatprep.subr.bf16.mxu0 0
    %1989 = vmatpush1.bf16.msra.mxu0 0
    %1990 = vmatprep.subr.bf16.mxu0 0
    %1991 = vmatpush1.bf16.msra.mxu0 0
    %1992 = vmatprep.subr.bf16.mxu0 0
    %1993 = vmatpush1.bf16.msra.mxu0 0
    %1994 = vmatprep.subr.bf16.mxu0 0
    %1995 = vmatpush1.bf16.msra.mxu0 0
    %1996 = vmatprep.subr.bf16.mxu0 0
    %1997 = vmatpush1.bf16.msra.mxu0 0
    %1998 = vmatprep.subr.bf16.mxu0 0
    %1999 = vmatpush1.bf16.msra.mxu0 0
    %2000 = vmatprep.subr.bf16.mxu0 0
    %2001 = vmatpush1.bf16.msra.mxu0 0
    %2002 = vmatprep.subr.bf16.mxu0 0
    %2003 = vmatpush1.bf16.msra.mxu0 0
    %2004 = vmatprep.mubr.bf16.mxu0 0
    %2005 = vmatmul.mubr.bf16.gmra.mrb[0].mxu0 %v1802
    %v2006 = vpop.f32.mrb[0].mxu0
    %v2007 = vadd.f32 %v1954, %v2006
    %v2008 = vpop.f32.mrb[0].mxu0
    %v2009 = vpop.f32.mrb[0].mxu0
    %v2010 = vadd.f32 %v1957, %v2009
    %v2011 = vpop.f32.mrb[0].mxu0
    %2012 = vdwg.mxu0
    %v2013 = vadd.f32 %v2007, %v126
    %v2014 = vadd.f32 %v2010, %v127
    %v2015 = vxor.u32 %v2013, 2147483648
    %v2016 = vxor.u32 %v2014, 2147483648
    %v2017 = vmul.f32 %v2015, 1.442695
    %v2018 = vpow.pop %v2017
    %v2019 = vmul.f32 %v2016, 1.442695
    %v2020 = vpow.pop %v2019
    %v2021 = vadd.f32 %v2018, 1.0
    %v2022 = vadd.f32 %v2020, 1.0
    %v2023 = vrcp.pop %v2021
    %v2024 = vmul.f32 1.0, %v2023
    %v2025 = vrcp.pop %v2022
    %v2026 = vmul.f32 1.0, %v2025
    %2029 = vrot.lane.b32.xlu0 %v2013, 32
    %v2030 = vpop.permute.xlu0 %2029
    %2031 = vrot.lane.b32.xlu0 %v2014, 32
    %v2032 = vpop.permute.xlu0 %2031
    %v2035 = vmul.f32 %v2024, %v2030
    %v2036 = vmul.f32 %v2026, %v2032
    %2039 = vrot.lane.b32.xlu0 %v2035, 64
    %v2040 = vpop.permute.xlu0 %2039
    %2041 = vrot.lane.b32.xlu0 %v2036, 64
    %v2042 = vpop.permute.xlu0 %2041
    %v2045 = vadd.f32 %v2013, %v2040
    %v2046 = vadd.f32 %v2014, %v2042
    %v2047 = vtanh.pop %v2045
    %v2048 = vtanh.pop %v2046
    %v2049 = vsub.f32 1.0, %v2024
    %v2050 = vsub.f32 1.0, %v2026
    %2053 = vrot.lane.b32.xlu0 %v2047, 96
    %v2054 = vpop.permute.xlu0 %2053
    %2055 = vrot.lane.b32.xlu0 %v2048, 96
    %v2056 = vpop.permute.xlu0 %2055
    %v2059 = vmul.f32 %v2049, %v2054
    %v2060 = vmul.f32 %v2050, %v2056
    %v2061 = vmul.f32 %v2024, %v1779
    %v2062 = vmul.f32 %v2026, %v1780
    %v2063 = vadd.f32 %v2059, %v2061
    %v2064 = vadd.f32 %v2060, %v2062
    %v2065 = vpack.c.bf16 %v2064, %v2063
    %v2066 = vld [vmem:[#allocation12] sm:$0xf]
    %v2067 = vld [vmem:[#allocation12 + $0x4] sm:$0xf]
    %v2068 = vld [vmem:[#allocation12 + $0x8] sm:$0xf]
    %v2069 = vld [vmem:[#allocation12 + $0xc] sm:$0xf]
    %2071 = vrot.lane.b32.xlu0 %v2065, 96
    %v2072 = vpop.permute.xlu0 %2071
    %v2077 = vunpack.c.l.b16 %v2066
    %v2078 = vunpack.c.l.b16 %v2067
    %v2079 = vunpack.c.l.b16 %v2068
    %v2080 = vunpack.c.l.b16 %v2069
    %v2081 = vpack.c.b16 %v2078, %v2077
    %v2082 = vpack.c.b16 %v2080, %v2079
    %v2086 = vsel %vm257, %v2072, 0
    %2088 = vmatprep.subr.bf16.mxu0 0
    %2089 = vmatpush1.bf16.msra.mxu0 %v2081
    %2090 = vmatprep.subr.bf16.mxu0 0
    %2091 = vmatpush1.bf16.msra.mxu0 %v2082
    %2092 = vmatprep.subr.bf16.mxu0 0
    %2093 = vmatpush1.bf16.msra.mxu0 0
    %2094 = vmatprep.subr.bf16.mxu0 0
    %2095 = vmatpush1.bf16.msra.mxu0 0
    %2096 = vmatprep.subr.bf16.mxu0 0
    %2097 = vmatpush1.bf16.msra.mxu0 0
    %2098 = vmatprep.subr.bf16.mxu0 0
    %2099 = vmatpush1.bf16.msra.mxu0 0
    %2100 = vmatprep.subr.bf16.mxu0 0
    %2101 = vmatpush1.bf16.msra.mxu0 0
    %2102 = vmatprep.subr.bf16.mxu0 0
    %2103 = vmatpush1.bf16.msra.mxu0 0
    %2104 = vmatprep.subr.bf16.mxu0 0
    %2105 = vmatpush1.bf16.msra.mxu0 0
    %2106 = vmatprep.subr.bf16.mxu0 0
    %2107 = vmatpush1.bf16.msra.mxu0 0
    %2108 = vmatprep.subr.bf16.mxu0 0
    %2109 = vmatpush1.bf16.msra.mxu0 0
    %2110 = vmatprep.subr.bf16.mxu0 0
    %2111 = vmatpush1.bf16.msra.mxu0 0
    %2112 = vmatprep.subr.bf16.mxu0 0
    %2113 = vmatpush1.bf16.msra.mxu0 0
    %2114 = vmatprep.subr.bf16.mxu0 0
    %2115 = vmatpush1.bf16.msra.mxu0 0
    %2116 = vmatprep.subr.bf16.mxu0 0
    %2117 = vmatpush1.bf16.msra.mxu0 0
    %2118 = vmatprep.subr.bf16.mxu0 0
    %2119 = vmatpush1.bf16.msra.mxu0 0
    %2120 = vmatprep.mubr.bf16.mxu0 0
    %2121 = vmatmul.mubr.bf16.gmra.mrb[0].mxu0 %v2086
    %v2122 = vpop.f32.mrb[0].mxu0
    %v2123 = vadd.f32 %v128, %v2122
    %v2124 = vpop.f32.mrb[0].mxu0
    %v2125 = vpop.f32.mrb[0].mxu0
    %v2126 = vadd.f32 %v129, %v2125
    %v2127 = vpop.f32.mrb[0].mxu0
    %2128 = vdwg.mxu0
    %s2129 = scalar_lea.vmem [#allocation15], 96
    %2130 = vst [vmem:[%s2129] sm:$0xff] %v2123
    %2131 = vst [vmem:[%s2129 + $0x8] sm:$0xff] %v2126
    %v2132 = vtanh.pop %v2123
    %v2133 = vtanh.pop %v2126
    %v2134 = vld [vmem:[#allocation10] sm:$0xf]
    %v2135 = vld [vmem:[#allocation10 + $0x4] sm:$0xf]
    %v2136 = vld [vmem:[#allocation10 + $0x8] sm:$0xf]
    %v2137 = vld [vmem:[#allocation10 + $0xc] sm:$0xf]
    %v2138 = vpack.c.bf16 %v2133, %v2132
    %v2139 = vld [vmem:[#allocation9] sm:$0xf]
    %v2140 = vld [vmem:[#allocation9 + $0x4] sm:$0xf]
    %v2141 = vld [vmem:[#allocation9 + $0x8] sm:$0xf]
    %v2142 = vld [vmem:[#allocation9 + $0xc] sm:$0xf]
    %v2143 = vld [vmem:[#allocation9 + $0x10] sm:$0xf]
    %v2144 = vld [vmem:[#allocation9 + $0x14] sm:$0xf]
    %v2145 = vld [vmem:[#allocation9 + $0x18] sm:$0xf]
    %v2146 = vld [vmem:[#allocation9 + $0x1c] sm:$0xf]
    %v2147 = vld [vmem:[#allocation9 + $0x20] sm:$0xf]
    %v2148 = vld [vmem:[#allocation9 + $0x24] sm:$0xf]
    %v2149 = vld [vmem:[#allocation9 + $0x28] sm:$0xf]
    %v2150 = vld [vmem:[#allocation9 + $0x2c] sm:$0xf]
    %v2151 = vld [vmem:[#allocation9 + $0x30] sm:$0xf]
    %v2152 = vld [vmem:[#allocation9 + $0x34] sm:$0xf]
    %v2153 = vld [vmem:[#allocation9 + $0x38] sm:$0xf]
    %v2154 = vld [vmem:[#allocation9 + $0x3c] sm:$0xf]
    %v2171 = vunpack.c.l.b16 %v2139
    %v2172 = vunpack.c.l.b16 %v2140
    %v2173 = vunpack.c.l.b16 %v2141
    %v2174 = vunpack.c.l.b16 %v2142
    %v2175 = vunpack.c.l.b16 %v2143
    %v2176 = vunpack.c.l.b16 %v2144
    %v2177 = vunpack.c.l.b16 %v2145
    %v2178 = vunpack.c.l.b16 %v2146
    %v2179 = vunpack.c.l.b16 %v2147
    %v2180 = vunpack.c.l.b16 %v2148
    %v2181 = vunpack.c.l.b16 %v2149
    %v2182 = vunpack.c.l.b16 %v2150
    %v2183 = vunpack.c.l.b16 %v2151
    %v2184 = vunpack.c.l.b16 %v2152
    %v2185 = vunpack.c.l.b16 %v2153
    %v2186 = vunpack.c.l.b16 %v2154
    %v2187 = vpack.c.b16 %v2172, %v2171
    %v2188 = vpack.c.b16 %v2174, %v2173
    %v2189 = vpack.c.b16 %v2176, %v2175
    %v2190 = vpack.c.b16 %v2178, %v2177
    %v2191 = vpack.c.b16 %v2180, %v2179
    %v2192 = vpack.c.b16 %v2182, %v2181
    %v2193 = vpack.c.b16 %v2184, %v2183
    %v2194 = vpack.c.b16 %v2186, %v2185
    %2203 = vmatprep.subr.bf16.mxu0 0
    %2204 = vmatpush1.bf16.msra.mxu0 %v2187
    %2205 = vmatprep.subr.bf16.mxu0 0
    %2206 = vmatpush1.bf16.msra.mxu0 %v2188
    %2207 = vmatprep.subr.bf16.mxu0 0
    %2208 = vmatpush1.bf16.msra.mxu0 %v2189
    %2209 = vmatprep.subr.bf16.mxu0 0
    %2210 = vmatpush1.bf16.msra.mxu0 %v2190
    %2211 = vmatprep.subr.bf16.mxu0 0
    %2212 = vmatpush1.bf16.msra.mxu0 %v2191
    %2213 = vmatprep.subr.bf16.mxu0 0
    %2214 = vmatpush1.bf16.msra.mxu0 %v2192
    %2215 = vmatprep.subr.bf16.mxu0 0
    %2216 = vmatpush1.bf16.msra.mxu0 %v2193
    %2217 = vmatprep.subr.bf16.mxu0 0
    %2218 = vmatpush1.bf16.msra.mxu0 %v2194
    %2219 = vmatprep.subr.bf16.mxu0 0
    %2220 = vmatpush1.bf16.msra.mxu0 0
    %2221 = vmatprep.subr.bf16.mxu0 0
    %2222 = vmatpush1.bf16.msra.mxu0 0
    %2223 = vmatprep.subr.bf16.mxu0 0
    %2224 = vmatpush1.bf16.msra.mxu0 0
    %2225 = vmatprep.subr.bf16.mxu0 0
    %2226 = vmatpush1.bf16.msra.mxu0 0
    %2227 = vmatprep.subr.bf16.mxu0 0
    %2228 = vmatpush1.bf16.msra.mxu0 0
    %2229 = vmatprep.subr.bf16.mxu0 0
    %2230 = vmatpush1.bf16.msra.mxu0 0
    %2231 = vmatprep.subr.bf16.mxu0 0
    %2232 = vmatpush1.bf16.msra.mxu0 0
    %2233 = vmatprep.subr.bf16.mxu0 0
    %2234 = vmatpush1.bf16.msra.mxu0 0
    %2235 = vmatprep.mubr.bf16.mxu0 0
    %2236 = vmatmul.mubr.bf16.gmra.mrb[0].mxu0 %v2138
    %v2237 = vpop.f32.mrb[0].mxu0
    %v2238 = vadd.f32 0.0, %v2237
    %v2239 = vpop.f32.mrb[0].mxu0
    %v2240 = vpop.f32.mrb[0].mxu0
    %v2241 = vadd.f32 0.0, %v2240
    %v2242 = vpop.f32.mrb[0].mxu0
    %2243 = vdwg.mxu0
    %v2248 = vunpack.c.l.b16 %v2134
    %v2249 = vunpack.c.l.b16 %v2135
    %v2250 = vunpack.c.l.b16 %v2136
    %v2251 = vunpack.c.l.b16 %v2137
    %v2252 = vpack.c.b16 %v2249, %v2248
    %v2253 = vpack.c.b16 %v2251, %v2250
    %2256 = vmatprep.subr.bf16.mxu0 0
    %2257 = vmatpush1.bf16.msra.mxu0 %v2252
    %2258 = vmatprep.subr.bf16.mxu0 0
    %2259 = vmatpush1.bf16.msra.mxu0 %v2253
    %2260 = vmatprep.subr.bf16.mxu0 0
    %2261 = vmatpush1.bf16.msra.mxu0 0
    %2262 = vmatprep.subr.bf16.mxu0 0
    %2263 = vmatpush1.bf16.msra.mxu0 0
    %2264 = vmatprep.subr.bf16.mxu0 0
    %2265 = vmatpush1.bf16.msra.mxu0 0
    %2266 = vmatprep.subr.bf16.mxu0 0
    %2267 = vmatpush1.bf16.msra.mxu0 0
    %2268 = vmatprep.subr.bf16.mxu0 0
    %2269 = vmatpush1.bf16.msra.mxu0 0
    %2270 = vmatprep.subr.bf16.mxu0 0
    %2271 = vmatpush1.bf16.msra.mxu0 0
    %2272 = vmatprep.subr.bf16.mxu0 0
    %2273 = vmatpush1.bf16.msra.mxu0 0
    %2274 = vmatprep.subr.bf16.mxu0 0
    %2275 = vmatpush1.bf16.msra.mxu0 0
    %2276 = vmatprep.subr.bf16.mxu0 0
    %2277 = vmatpush1.bf16.msra.mxu0 0
    %2278 = vmatprep.subr.bf16.mxu0 0
    %2279 = vmatpush1.bf16.msra.mxu0 0
    %2280 = vmatprep.subr.bf16.mxu0 0
    %2281 = vmatpush1.bf16.msra.mxu0 0
    %2282 = vmatprep.subr.bf16.mxu0 0
    %2283 = vmatpush1.bf16.msra.mxu0 0
    %2284 = vmatprep.subr.bf16.mxu0 0
    %2285 = vmatpush1.bf16.msra.mxu0 0
    %2286 = vmatprep.subr.bf16.mxu0 0
    %2287 = vmatpush1.bf16.msra.mxu0 0
    %2288 = vmatprep.mubr.bf16.mxu0 0
    %2289 = vmatmul.mubr.bf16.gmra.mrb[0].mxu0 %v2086
    %v2290 = vpop.f32.mrb[0].mxu0
    %v2291 = vadd.f32 %v2238, %v2290
    %v2292 = vpop.f32.mrb[0].mxu0
    %v2293 = vpop.f32.mrb[0].mxu0
    %v2294 = vadd.f32 %v2241, %v2293
    %v2295 = vpop.f32.mrb[0].mxu0
    %2296 = vdwg.mxu0
    %v2297 = vadd.f32 %v2291, %v126
    %v2298 = vadd.f32 %v2294, %v127
    %v2299 = vxor.u32 %v2297, 2147483648
    %v2300 = vxor.u32 %v2298, 2147483648
    %v2301 = vmul.f32 %v2299, 1.442695
    %v2302 = vpow.pop %v2301
    %v2303 = vmul.f32 %v2300, 1.442695
    %v2304 = vpow.pop %v2303
    %v2305 = vadd.f32 %v2302, 1.0
    %v2306 = vadd.f32 %v2304, 1.0
    %v2307 = vrcp.pop %v2305
    %v2308 = vmul.f32 1.0, %v2307
    %v2309 = vrcp.pop %v2306
    %v2310 = vmul.f32 1.0, %v2309
    %2313 = vrot.lane.b32.xlu0 %v2297, 32
    %v2314 = vpop.permute.xlu0 %2313
    %2315 = vrot.lane.b32.xlu0 %v2298, 32
    %v2316 = vpop.permute.xlu0 %2315
    %v2319 = vmul.f32 %v2308, %v2314
    %v2320 = vmul.f32 %v2310, %v2316
    %2323 = vrot.lane.b32.xlu0 %v2319, 64
    %v2324 = vpop.permute.xlu0 %2323
    %2325 = vrot.lane.b32.xlu0 %v2320, 64
    %v2326 = vpop.permute.xlu0 %2325
    %v2329 = vadd.f32 %v2297, %v2324
    %v2330 = vadd.f32 %v2298, %v2326
    %v2331 = vtanh.pop %v2329
    %v2332 = vtanh.pop %v2330
    %v2333 = vsub.f32 1.0, %v2308
    %v2334 = vsub.f32 1.0, %v2310
    %2337 = vrot.lane.b32.xlu0 %v2331, 96
    %v2338 = vpop.permute.xlu0 %2337
    %2339 = vrot.lane.b32.xlu0 %v2332, 96
    %v2340 = vpop.permute.xlu0 %2339
    %v2343 = vmul.f32 %v2333, %v2338
    %v2344 = vmul.f32 %v2334, %v2340
    %v2345 = vmul.f32 %v2308, %v2063
    %v2346 = vmul.f32 %v2310, %v2064
    %v2347 = vadd.f32 %v2343, %v2345
    %v2348 = vadd.f32 %v2344, %v2346
    %v2349 = vpack.c.bf16 %v2348, %v2347
    %v2350 = vld [vmem:[#allocation12] sm:$0xf]
    %v2351 = vld [vmem:[#allocation12 + $0x4] sm:$0xf]
    %v2352 = vld [vmem:[#allocation12 + $0x8] sm:$0xf]
    %v2353 = vld [vmem:[#allocation12 + $0xc] sm:$0xf]
    %2355 = vrot.lane.b32.xlu0 %v2349, 96
    %v2356 = vpop.permute.xlu0 %2355
    %v2361 = vunpack.c.l.b16 %v2350
    %v2362 = vunpack.c.l.b16 %v2351
    %v2363 = vunpack.c.l.b16 %v2352
    %v2364 = vunpack.c.l.b16 %v2353
    %v2365 = vpack.c.b16 %v2362, %v2361
    %v2366 = vpack.c.b16 %v2364, %v2363
    %v2370 = vsel %vm257, %v2356, 0
    %2372 = vmatprep.subr.bf16.mxu0 0
    %2373 = vmatpush1.bf16.msra.mxu0 %v2365
    %2374 = vmatprep.subr.bf16.mxu0 0
    %2375 = vmatpush1.bf16.msra.mxu0 %v2366
    %2376 = vmatprep.subr.bf16.mxu0 0
    %2377 = vmatpush1.bf16.msra.mxu0 0
    %2378 = vmatprep.subr.bf16.mxu0 0
    %2379 = vmatpush1.bf16.msra.mxu0 0
    %2380 = vmatprep.subr.bf16.mxu0 0
    %2381 = vmatpush1.bf16.msra.mxu0 0
    %2382 = vmatprep.subr.bf16.mxu0 0
    %2383 = vmatpush1.bf16.msra.mxu0 0
    %2384 = vmatprep.subr.bf16.mxu0 0
    %2385 = vmatpush1.bf16.msra.mxu0 0
    %2386 = vmatprep.subr.bf16.mxu0 0
    %2387 = vmatpush1.bf16.msra.mxu0 0
    %2388 = vmatprep.subr.bf16.mxu0 0
    %2389 = vmatpush1.bf16.msra.mxu0 0
    %2390 = vmatprep.subr.bf16.mxu0 0
    %2391 = vmatpush1.bf16.msra.mxu0 0
    %2392 = vmatprep.subr.bf16.mxu0 0
    %2393 = vmatpush1.bf16.msra.mxu0 0
    %2394 = vmatprep.subr.bf16.mxu0 0
    %2395 = vmatpush1.bf16.msra.mxu0 0
    %2396 = vmatprep.subr.bf16.mxu0 0
    %2397 = vmatpush1.bf16.msra.mxu0 0
    %2398 = vmatprep.subr.bf16.mxu0 0
    %2399 = vmatpush1.bf16.msra.mxu0 0
    %2400 = vmatprep.subr.bf16.mxu0 0
    %2401 = vmatpush1.bf16.msra.mxu0 0
    %2402 = vmatprep.subr.bf16.mxu0 0
    %2403 = vmatpush1.bf16.msra.mxu0 0
    %2404 = vmatprep.mubr.bf16.mxu0 0
    %2405 = vmatmul.mubr.bf16.gmra.mrb[0].mxu0 %v2370
    %v2406 = vpop.f32.mrb[0].mxu0
    %v2407 = vadd.f32 %v128, %v2406
    %v2408 = vpop.f32.mrb[0].mxu0
    %v2409 = vpop.f32.mrb[0].mxu0
    %v2410 = vadd.f32 %v129, %v2409
    %v2411 = vpop.f32.mrb[0].mxu0
    %2412 = vdwg.mxu0
    %s2413 = scalar_lea.vmem [#allocation15], 112
    %2414 = vst [vmem:[%s2413] sm:$0xff] %v2407
    %2415 = vst [vmem:[%s2413 + $0x8] sm:$0xff] %v2410
    %v2416 = vtanh.pop %v2407
    %v2417 = vtanh.pop %v2410
    %2418 = vst [vmem:[#allocation2] sm:$0xff] %v2416
    %2419 = vst [vmem:[#allocation2 + $0x8] sm:$0xff] %v2417
    %2422 = vrot.lane.b32.xlu0 %v2347, 96
    %v2423 = vpop.permute.xlu0 %2422
    %2424 = vrot.lane.b32.xlu0 %v2348, 96
    %v2425 = vpop.permute.xlu0 %2424
    %2428 = vst.msk [vmem:[#allocation3] sm:$0xff] %vm257, %v2423
    %2429 = vst.msk [vmem:[#allocation3 + $0x8] sm:$0xff] %vm257, %v2425
    %2430 = vst.msk [vmem:[#allocation16] sm:$0xff] %vm257, %v2423
    %2431 = vst.msk [vmem:[#allocation16 + $0x8] sm:$0xff] %vm257, %v2425
    // Predicated region
    $region58: #{tpu_custom_call.1} parent=1 // pred_check
      _
    $region59: #{tpu_custom_call.1} parent=1 // pred_check_branch
      %2433 = sbr.rel (0) target = $region61
    $region60: #{tpu_custom_call.1} parent=1 // pred_region
      %s2435 = ssub.s32 2048, 2048
      %2436 = vsyncadd [#allocation6], %s2435
      %s2437 = sshll.u32 [#allocation15], 4
      %s2438 = int_to_ptr.vmem [resolvable:$true] %s2437
      %2443 = dma.vmem_to_hbm [thread:$0]  %s2438, 2048, %s7, [#allocation6], 128, 128, 8
    $region61: #{tpu_custom_call.1} parent=1 // pred_fallthru
      _
    // Predicated region
    $region62: #{tpu_custom_call.1} parent=1 // pred_check
      _
    $region63: #{tpu_custom_call.1} parent=1 // pred_check_branch
      %2445 = sbr.rel (0) target = $region65
    $region64: #{tpu_custom_call.1} parent=1 // pred_region
      %s2447 = ssub.s32 256, 256
      %2448 = vsyncadd [#allocation17], %s2447
      %s2449 = sshll.u32 [#allocation16], 4
      %s2450 = int_to_ptr.vmem [resolvable:$true] %s2449
      %2455 = dma.vmem_to_hbm [thread:$0]  %s2450, 256, %s8, [#allocation17], 128, 128, 8
    $region65: #{tpu_custom_call.1} parent=1 // pred_fallthru
      _
    // Predicated region
    $region66: #{tpu_custom_call.1} parent=1 // pred_check
      _
    $region67: #{tpu_custom_call.1} parent=1 // pred_check_branch
      %2457 = sbr.rel (0) target = $region69
    $region68: #{tpu_custom_call.1} parent=1 // pred_region
      %2458 = dma.done [#allocation6], 2048
    $region69: #{tpu_custom_call.1} parent=1 // pred_fallthru
      _
    // Predicated region
    $region70: #{tpu_custom_call.1} parent=1 // pred_check
      _
    $region71: #{tpu_custom_call.1} parent=1 // pred_check_branch
      %2460 = sbr.rel (0) target = $region73
    $region72: #{tpu_custom_call.1} parent=1 // pred_region
      %2461 = dma.done [#allocation17], 256
    $region73: #{tpu_custom_call.1} parent=1 // pred_fallthru
      _
    %2462 = vsyncpa [#allocation5], 1
    %2463 = vsyncpa [#allocation8], 1
    %2464 = vsyncpa [#allocation11], 1
    %2465 = vsyncpa [#allocation14], 1
    %2466 = vsyncpa [#allocation6], 1
    %2467 = vsyncpa [#allocation17], 1

</llo_original>
